<compile_context>
chip_gen: v6e
topology: v6e:2x2x1
jax: 0.10.0
libtpu: 0.0.40
codegen_flags: <defaults>
</compile_context>

<pallas_src>
import jax
import jax.numpy as jnp
from jax.experimental import pallas as pl
from jax.experimental.pallas import tpu as pltpu

CARD_IN, ACT_IN = 208, 240
H1 = 128          # per-branch layer-1 width
H2 = 128          # fused layer-2 width (64 card + 64 action)
H3 = 64           # fused layer-3 width (32 card + 32 action)
HEAD_OUT = 3      # policy (2) + value (1), fused on the output axis


def _round_up(x, m):
    return ((x + m - 1) // m) * m


def _fc_kernel(obs_ref, act_ref,
               cw1_ref, cb1_ref, aw1_ref, ab1_ref,
               w2c_ref, w2a_ref, b2_ref,
               w3_ref, b3_ref,
               wh_ref, bh_ref,
               out_ref):
    """One batch tile: per-branch layer 1, concat-free fused layers 2/3, fused head.

    Matmuls: bf16 operands, f32 MXU accumulation. Bias + ReLU in f32, cast back to
    bf16 for the next matmul. Weights are VMEM-resident across the whole grid.
    """
    bf16, f32 = jnp.bfloat16, jnp.float32

    # Layer 1 (branches separate). Inputs arrive as f32 tiles; cast in-VMEM.
    c = obs_ref[...].astype(bf16)                                        # (BT, 208)
    a = act_ref[...].astype(bf16)                                        # (BT, 240)
    c = jnp.dot(c, cw1_ref[...], preferred_element_type=f32) + cb1_ref[...]
    a = jnp.dot(a, aw1_ref[...], preferred_element_type=f32) + ab1_ref[...]
    c = jnp.maximum(c, 0.0).astype(bf16)                                 # (BT, 128)
    a = jnp.maximum(a, 0.0).astype(bf16)                                 # (BT, 128)

    # Layer 2: branch outputs occupy disjoint column halves -> fuse by addition.
    h = (jnp.dot(c, w2c_ref[...], preferred_element_type=f32)
         + jnp.dot(a, w2a_ref[...], preferred_element_type=f32)
         + b2_ref[...])                                                  # (BT, 128)
    h = jnp.maximum(h, 0.0).astype(bf16)

    # Layer 3: block-diagonal fused weight.
    h = jnp.dot(h, w3_ref[...], preferred_element_type=f32) + b3_ref[...]  # (BT, 64)
    h = jnp.maximum(h, 0.0).astype(bf16)

    # Fused policy/value head.
    out_ref[...] = (
        jnp.dot(h, wh_ref[...], preferred_element_type=f32) + bh_ref[...]  # (BT, 3)
    )


def _pack_params(params):
    """Pack per-branch weights for the fused kernel: bf16 weights, f32 biases."""
    f32, bf16 = jnp.float32, jnp.bfloat16

    def blkdiag(tl, br):
        tl = tl.astype(f32)
        br = br.astype(f32)
        out = jnp.zeros((tl.shape[0] + br.shape[0], tl.shape[1] + br.shape[1]), f32)
        out = out.at[: tl.shape[0], : tl.shape[1]].set(tl)
        out = out.at[tl.shape[0]:, tl.shape[1]:].set(br)
        return out

    cw1 = params["cw1"].astype(bf16)                                       # (208, 128)
    cb1 = params["cb1"].astype(f32)                                        # (1, 128)
    aw1 = params["aw1"].astype(bf16)                                       # (240, 128)
    ab1 = params["ab1"].astype(f32)                                        # (1, 128)

    z = jnp.zeros((128, 64), f32)
    w2c = jnp.concatenate([params["cw2"].astype(f32), z], 1).astype(bf16)  # (128, 128)
    w2a = jnp.concatenate([z, params["aw2"].astype(f32)], 1).astype(bf16)  # (128, 128)
    b2 = jnp.concatenate([params["cb2"], params["ab2"]], 1).astype(f32)    # (1, 128)

    w3 = blkdiag(params["cw3"], params["aw3"]).astype(bf16)                # (128, 64)
    b3 = jnp.concatenate([params["cb3"], params["ab3"]], 1).astype(f32)    # (1, 64)

    wh = jnp.concatenate([params["pw"], params["vw"]], 1).astype(bf16)     # (64, 3)
    bh = jnp.concatenate([params["pb"], params["vb"]], 1).astype(f32)      # (1, 3)
    return (cw1, cb1, aw1, ab1, w2c, w2a, b2, w3, b3, wh, bh)


def fully_connected_model_v2(obs, action_history, params, *, b_tile=1024):
    """obs flattens to (B, 208); action_history flattens to (B, 240).

    Returns (policy (B, 2), value (B,)) matching forward() / value_function().
    """
    B = obs.shape[0]
    obs_flat = obs.reshape(B, -1)          # free, contiguous reshape
    act_flat = action_history.reshape(B, -1)
    assert obs_flat.shape[1] == CARD_IN and act_flat.shape[1] == ACT_IN

    # Batch tile: multiple of 128 (MXU-M aligned), capped; pad B so every grid step is
    # a full tile (padded rows are sliced off below).
    bt = min(b_tile, _round_up(B, 128))
    b_pad = _round_up(B, bt)
    if b_pad != B:
        obs_flat = jnp.pad(obs_flat, ((0, b_pad - B), (0, 0)))
        act_flat = jnp.pad(act_flat, ((0, b_pad - B), (0, 0)))

    packed = _pack_params(params)

    const = lambda i: (0, 0)  # weights: same block every grid step -> DMA'd once
    in_specs = [
        pl.BlockSpec((bt, CARD_IN), lambda i: (i, 0)),
        pl.BlockSpec((bt, ACT_IN), lambda i: (i, 0)),
    ] + [pl.BlockSpec(p.shape, const) for p in packed]

    out = pl.pallas_call(
        _fc_kernel,
        out_shape=jax.ShapeDtypeStruct((b_pad, HEAD_OUT), jnp.float32),
        grid=(b_pad // bt,),
        in_specs=in_specs,
        out_specs=pl.BlockSpec((bt, HEAD_OUT), lambda i: (i, 0)),
        compiler_params=pltpu.CompilerParams(
            dimension_semantics=("parallel",),      # megacore sharding on v7x
            vmem_limit_bytes=32 * 1024 * 1024,       # raises v5e's 16 MiB default
        ),
    )(obs_flat, act_flat, *packed)

    out = out[:B]
    policy = out[:, :2]
    value = out[:, 2]                 # value_function() returns the flattened value
    return policy, value


def init_params(key):
    """Deterministic synthetic parameters matching the nn.Linear shapes (f32)."""
    dims = {
        # card_net
        "cw1": (208, 128), "cb1": (1, 128),
        "cw2": (128, 64),  "cb2": (1, 64),
        "cw3": (64, 32),   "cb3": (1, 32),
        # action_net
        "aw1": (240, 128), "ab1": (1, 128),
        "aw2": (128, 64),  "ab2": (1, 64),
        "aw3": (64, 32),   "ab3": (1, 32),
        # heads
        "pw": (64, 2), "pb": (1, 2),
        "vw": (64, 1), "vb": (1, 1),
    }
    params = {}
    keys = jax.random.split(key, len(dims))
    for (name, shape), k in zip(dims.items(), keys):
        fan_in = shape[0] if shape[0] > 1 else shape[1]
        scale = 1.0 / jnp.sqrt(jnp.float32(max(fan_in, 1)))
        params[name] = jax.random.uniform(k, shape, jnp.float32, -1.0, 1.0) * scale
    return params


def reference_f32(obs, act, params):
    """Pure-JAX f32 reference of the PyTorch forward."""
    B = obs.shape[0]
    relu = lambda t: jnp.maximum(t, 0.0)
    c = obs.reshape(B, -1).astype(jnp.float32)
    a = act.reshape(B, -1).astype(jnp.float32)
    c = relu(c @ params["cw1"] + params["cb1"])
    c = relu(c @ params["cw2"] + params["cb2"])
    c = relu(c @ params["cw3"] + params["cb3"])
    a = relu(a @ params["aw1"] + params["ab1"])
    a = relu(a @ params["aw2"] + params["ab2"])
    a = relu(a @ params["aw3"] + params["ab3"])
    h = jnp.concatenate([c, a], axis=1)
    policy = h @ params["pw"] + params["pb"]
    value = (h @ params["vw"] + params["vb"]).reshape(-1)
    return policy, value


def reference_bf16_mirror(obs, act, params):
    """Mirrors the kernel's bf16-matmul / f32-accumulate arithmetic exactly."""
    B = obs.shape[0]
    bf16, f32 = jnp.bfloat16, jnp.float32
    cw1, cb1, aw1, ab1, w2c, w2a, b2, w3, b3, wh, bh = _pack_params(params)
    c = obs.reshape(B, -1).astype(bf16)
    a = act.reshape(B, -1).astype(bf16)
    c = jnp.maximum(jnp.dot(c, cw1, preferred_element_type=f32) + cb1, 0.0).astype(bf16)
    a = jnp.maximum(jnp.dot(a, aw1, preferred_element_type=f32) + ab1, 0.0).astype(bf16)
    h = (jnp.dot(c, w2c, preferred_element_type=f32)
         + jnp.dot(a, w2a, preferred_element_type=f32) + b2)
    h = jnp.maximum(h, 0.0).astype(bf16)
    h = jnp.maximum(jnp.dot(h, w3, preferred_element_type=f32) + b3, 0.0).astype(bf16)
    out = jnp.dot(h, wh, preferred_element_type=f32) + bh
    return out[:, :2], out[:, 2]


if __name__ == "__main__":
    key = jax.random.PRNGKey(0)
    k_obs, k_act, k_param = jax.random.split(key, 3)

    batch = 2
    # observation: (B, 4, 13, 4) -> 208 features; action_history: (B, 4, 12, 5) -> 240.
    obs = jax.random.normal(k_obs, (batch, 4, 13, 4), dtype=jnp.float32)
    action_history = jax.random.normal(k_act, (batch, 4, 12, 5), dtype=jnp.float32)
    params = init_params(k_param)

    policy, value = fully_connected_model_v2(obs, action_history, params)
    policy = jax.block_until_ready(policy)
    value = jax.block_until_ready(value)
    assert policy.shape == (batch, 2) and value.shape == (batch,)

    # Tight check vs. a reference that mirrors the kernel's bf16 arithmetic.
    mp, mv = reference_bf16_mirror(obs, action_history, params)
    assert jnp.allclose(policy, mp, atol=1e-2, rtol=1e-2)
    assert jnp.allclose(value, mv, atol=1e-2, rtol=1e-2)

    # Loose check vs. the f32 PyTorch-equivalent reference (bf16 rounding drift).
    fp, fv = reference_f32(obs, action_history, params)
    assert jnp.allclose(policy, fp, atol=1e-1, rtol=1e-1)
    assert jnp.allclose(value, fv, atol=1e-1, rtol=1e-1)

    print("KERNEL_OK")
</pallas_src>

<mosaic_0001>
module attributes {stable_mosaic.version = 11 : i64} {
  func.func @_fc_kernel(%arg0: i32, %arg1: memref<128x208xf32, #tpu.memory_space<vmem>>, %arg2: memref<128x240xf32, #tpu.memory_space<vmem>>, %arg3: memref<208x128xbf16, #tpu.memory_space<vmem>>, %arg4: memref<1x128xf32, #tpu.memory_space<vmem>>, %arg5: memref<240x128xbf16, #tpu.memory_space<vmem>>, %arg6: memref<1x128xf32, #tpu.memory_space<vmem>>, %arg7: memref<128x128xbf16, #tpu.memory_space<vmem>>, %arg8: memref<128x128xbf16, #tpu.memory_space<vmem>>, %arg9: memref<1x128xf32, #tpu.memory_space<vmem>>, %arg10: memref<128x64xbf16, #tpu.memory_space<vmem>>, %arg11: memref<1x64xf32, #tpu.memory_space<vmem>>, %arg12: memref<64x3xbf16, #tpu.memory_space<vmem>>, %arg13: memref<1x3xf32, #tpu.memory_space<vmem>>, %arg14: memref<128x3xf32, #tpu.memory_space<vmem>>) attributes {dimension_semantics = [#tpu.dimension_semantics<parallel>], iteration_bounds = array<i64: 1>, scalar_prefetch = 0 : i64, scratch_operands = 0 : i64, tpu.core_type = #tpu.core_type<tc>, window_params = [{transform_indices = @transform_0, window_bounds = array<i64: 128, 208>}, {transform_indices = @transform_1, window_bounds = array<i64: 128, 240>}, {pipeline_mode = #tpu.pipeline_mode<synchronous>, transform_indices = @transform_2, window_bounds = array<i64: 208, 128>}, {pipeline_mode = #tpu.pipeline_mode<synchronous>, transform_indices = @transform_3, window_bounds = array<i64: 1, 128>}, {pipeline_mode = #tpu.pipeline_mode<synchronous>, transform_indices = @transform_4, window_bounds = array<i64: 240, 128>}, {pipeline_mode = #tpu.pipeline_mode<synchronous>, transform_indices = @transform_5, window_bounds = array<i64: 1, 128>}, {pipeline_mode = #tpu.pipeline_mode<synchronous>, transform_indices = @transform_6, window_bounds = array<i64: 128, 128>}, {pipeline_mode = #tpu.pipeline_mode<synchronous>, transform_indices = @transform_7, window_bounds = array<i64: 128, 128>}, {pipeline_mode = #tpu.pipeline_mode<synchronous>, transform_indices = @transform_8, window_bounds = array<i64: 1, 128>}, {pipeline_mode = #tpu.pipeline_mode<synchronous>, transform_indices = @transform_9, window_bounds = array<i64: 128, 64>}, {pipeline_mode = #tpu.pipeline_mode<synchronous>, transform_indices = @transform_10, window_bounds = array<i64: 1, 64>}, {pipeline_mode = #tpu.pipeline_mode<synchronous>, transform_indices = @transform_11, window_bounds = array<i64: 64, 3>}, {pipeline_mode = #tpu.pipeline_mode<synchronous>, transform_indices = @transform_12, window_bounds = array<i64: 1, 3>}, {transform_indices = @transform_13, window_bounds = array<i64: 128, 3>}]} {
    %c0 = arith.constant 0 : index
    %c0_0 = arith.constant 0 : index
    %0 = vector.load %arg1[%c0, %c0_0] : memref<128x208xf32, #tpu.memory_space<vmem>>, vector<128x208xf32>
    %1 = arith.truncf %0 : vector<128x208xf32> to vector<128x208xbf16>
    %c0_1 = arith.constant 0 : index
    %c0_2 = arith.constant 0 : index
    %2 = vector.load %arg2[%c0_1, %c0_2] : memref<128x240xf32, #tpu.memory_space<vmem>>, vector<128x240xf32>
    %3 = arith.truncf %2 : vector<128x240xf32> to vector<128x240xbf16>
    %c0_3 = arith.constant 0 : index
    %c0_4 = arith.constant 0 : index
    %4 = vector.load %arg3[%c0_3, %c0_4] : memref<208x128xbf16, #tpu.memory_space<vmem>>, vector<208x128xbf16>
    %cst = arith.constant dense<0.000000e+00> : vector<128x128xf32>
    %5 = tpu.matmul %1, %4, %cst {dimension_numbers = #tpu.dot_dimension_numbers<[1], [0], [0], [1], [0, 0, 1, 1], [], []>} : vector<128x208xbf16>, vector<208x128xbf16>, vector<128x128xf32> -> vector<128x128xf32>
    %c0_5 = arith.constant 0 : index
    %c0_6 = arith.constant 0 : index
    %6 = vector.load %arg4[%c0_5, %c0_6] : memref<1x128xf32, #tpu.memory_space<vmem>>, vector<1x128xf32>
    %7 = vector.broadcast %6 : vector<1x128xf32> to vector<128x128xf32>
    %8 = arith.addf %5, %7 : vector<128x128xf32>
    %c0_7 = arith.constant 0 : index
    %c0_8 = arith.constant 0 : index
    %9 = vector.load %arg5[%c0_7, %c0_8] : memref<240x128xbf16, #tpu.memory_space<vmem>>, vector<240x128xbf16>
    %cst_9 = arith.constant dense<0.000000e+00> : vector<128x128xf32>
    %10 = tpu.matmul %3, %9, %cst_9 {dimension_numbers = #tpu.dot_dimension_numbers<[1], [0], [0], [1], [0, 0, 1, 1], [], []>} : vector<128x240xbf16>, vector<240x128xbf16>, vector<128x128xf32> -> vector<128x128xf32>
    %c0_10 = arith.constant 0 : index
    %c0_11 = arith.constant 0 : index
    %11 = vector.load %arg6[%c0_10, %c0_11] : memref<1x128xf32, #tpu.memory_space<vmem>>, vector<1x128xf32>
    %12 = vector.broadcast %11 : vector<1x128xf32> to vector<128x128xf32>
    %13 = arith.addf %10, %12 : vector<128x128xf32>
    %cst_12 = arith.constant 0.000000e+00 : f32
    %14 = vector.broadcast %cst_12 : f32 to vector<128x128xf32>
    %15 = arith.maximumf %8, %14 : vector<128x128xf32>
    %16 = arith.truncf %15 : vector<128x128xf32> to vector<128x128xbf16>
    %cst_13 = arith.constant 0.000000e+00 : f32
    %17 = vector.broadcast %cst_13 : f32 to vector<128x128xf32>
    %18 = arith.maximumf %13, %17 : vector<128x128xf32>
    %19 = arith.truncf %18 : vector<128x128xf32> to vector<128x128xbf16>
    %c0_14 = arith.constant 0 : index
    %c0_15 = arith.constant 0 : index
    %20 = vector.load %arg7[%c0_14, %c0_15] : memref<128x128xbf16, #tpu.memory_space<vmem>>, vector<128x128xbf16>
    %cst_16 = arith.constant dense<0.000000e+00> : vector<128x128xf32>
    %21 = tpu.matmul %16, %20, %cst_16 {dimension_numbers = #tpu.dot_dimension_numbers<[1], [0], [0], [1], [0, 0, 1, 1], [], []>} : vector<128x128xbf16>, vector<128x128xbf16>, vector<128x128xf32> -> vector<128x128xf32>
    %c0_17 = arith.constant 0 : index
    %c0_18 = arith.constant 0 : index
    %22 = vector.load %arg8[%c0_17, %c0_18] : memref<128x128xbf16, #tpu.memory_space<vmem>>, vector<128x128xbf16>
    %cst_19 = arith.constant dense<0.000000e+00> : vector<128x128xf32>
    %23 = tpu.matmul %19, %22, %cst_19 {dimension_numbers = #tpu.dot_dimension_numbers<[1], [0], [0], [1], [0, 0, 1, 1], [], []>} : vector<128x128xbf16>, vector<128x128xbf16>, vector<128x128xf32> -> vector<128x128xf32>
    %24 = arith.addf %21, %23 : vector<128x128xf32>
    %c0_20 = arith.constant 0 : index
    %c0_21 = arith.constant 0 : index
    %25 = vector.load %arg9[%c0_20, %c0_21] : memref<1x128xf32, #tpu.memory_space<vmem>>, vector<1x128xf32>
    %26 = vector.broadcast %25 : vector<1x128xf32> to vector<128x128xf32>
    %27 = arith.addf %24, %26 : vector<128x128xf32>
    %cst_22 = arith.constant 0.000000e+00 : f32
    %28 = vector.broadcast %cst_22 : f32 to vector<128x128xf32>
    %29 = arith.maximumf %27, %28 : vector<128x128xf32>
    %30 = arith.truncf %29 : vector<128x128xf32> to vector<128x128xbf16>
    %c0_23 = arith.constant 0 : index
    %c0_24 = arith.constant 0 : index
    %31 = vector.load %arg10[%c0_23, %c0_24] : memref<128x64xbf16, #tpu.memory_space<vmem>>, vector<128x64xbf16>
    %cst_25 = arith.constant dense<0.000000e+00> : vector<128x64xf32>
    %32 = tpu.matmul %30, %31, %cst_25 {dimension_numbers = #tpu.dot_dimension_numbers<[1], [0], [0], [1], [0, 0, 1, 1], [], []>} : vector<128x128xbf16>, vector<128x64xbf16>, vector<128x64xf32> -> vector<128x64xf32>
    %c0_26 = arith.constant 0 : index
    %c0_27 = arith.constant 0 : index
    %33 = vector.load %arg11[%c0_26, %c0_27] : memref<1x64xf32, #tpu.memory_space<vmem>>, vector<1x64xf32>
    %34 = vector.broadcast %33 : vector<1x64xf32> to vector<128x64xf32>
    %35 = arith.addf %32, %34 : vector<128x64xf32>
    %cst_28 = arith.constant 0.000000e+00 : f32
    %36 = vector.broadcast %cst_28 : f32 to vector<128x64xf32>
    %37 = arith.maximumf %35, %36 : vector<128x64xf32>
    %38 = arith.truncf %37 : vector<128x64xf32> to vector<128x64xbf16>
    %c0_29 = arith.constant 0 : index
    %c0_30 = arith.constant 0 : index
    %39 = vector.load %arg12[%c0_29, %c0_30] : memref<64x3xbf16, #tpu.memory_space<vmem>>, vector<64x3xbf16>
    %cst_31 = arith.constant dense<0.000000e+00> : vector<128x3xf32>
    %40 = tpu.matmul %38, %39, %cst_31 {dimension_numbers = #tpu.dot_dimension_numbers<[1], [0], [0], [1], [0, 0, 1, 1], [], []>} : vector<128x64xbf16>, vector<64x3xbf16>, vector<128x3xf32> -> vector<128x3xf32>
    %c0_32 = arith.constant 0 : index
    %c0_33 = arith.constant 0 : index
    %41 = vector.load %arg13[%c0_32, %c0_33] : memref<1x3xf32, #tpu.memory_space<vmem>>, vector<1x3xf32>
    %42 = vector.broadcast %41 : vector<1x3xf32> to vector<128x3xf32>
    %43 = arith.addf %40, %42 : vector<128x3xf32>
    %c0_34 = arith.constant 0 : index
    %c0_35 = arith.constant 0 : index
    %44 = vector.load %arg14[%c0_34, %c0_35] : memref<128x3xf32, #tpu.memory_space<vmem>>, vector<128x3xf32>
    tpu.vector_store %arg14[%c0_34, %c0_35], %43 {strides = array<i32>} : memref<128x3xf32, #tpu.memory_space<vmem>>, vector<128x3xf32>,
    return
  }
  func.func @transform_0(%arg0: i32) -> (i32, i32) {
    %c0_i32 = arith.constant 0 : i32
    %c0_i32_0 = arith.constant 0 : i32
    return %arg0, %c0_i32 : i32, i32
  }
  func.func @transform_1(%arg0: i32) -> (i32, i32) {
    %c0_i32 = arith.constant 0 : i32
    %c0_i32_0 = arith.constant 0 : i32
    return %arg0, %c0_i32 : i32, i32
  }
  func.func @transform_2(%arg0: i32) -> (i32, i32) {
    %c0_i32 = arith.constant 0 : i32
    %c0_i32_0 = arith.constant 0 : i32
    %c0_i32_1 = arith.constant 0 : i32
    return %c0_i32, %c0_i32_0 : i32, i32
  }
  func.func @transform_3(%arg0: i32) -> (i32, i32) {
    %c0_i32 = arith.constant 0 : i32
    %c0_i32_0 = arith.constant 0 : i32
    %c0_i32_1 = arith.constant 0 : i32
    return %c0_i32, %c0_i32_0 : i32, i32
  }
  func.func @transform_4(%arg0: i32) -> (i32, i32) {
    %c0_i32 = arith.constant 0 : i32
    %c0_i32_0 = arith.constant 0 : i32
    %c0_i32_1 = arith.constant 0 : i32
    return %c0_i32, %c0_i32_0 : i32, i32
  }
  func.func @transform_5(%arg0: i32) -> (i32, i32) {
    %c0_i32 = arith.constant 0 : i32
    %c0_i32_0 = arith.constant 0 : i32
    %c0_i32_1 = arith.constant 0 : i32
    return %c0_i32, %c0_i32_0 : i32, i32
  }
  func.func @transform_6(%arg0: i32) -> (i32, i32) {
    %c0_i32 = arith.constant 0 : i32
    %c0_i32_0 = arith.constant 0 : i32
    %c0_i32_1 = arith.constant 0 : i32
    return %c0_i32, %c0_i32_0 : i32, i32
  }
  func.func @transform_7(%arg0: i32) -> (i32, i32) {
    %c0_i32 = arith.constant 0 : i32
    %c0_i32_0 = arith.constant 0 : i32
    %c0_i32_1 = arith.constant 0 : i32
    return %c0_i32, %c0_i32_0 : i32, i32
  }
  func.func @transform_8(%arg0: i32) -> (i32, i32) {
    %c0_i32 = arith.constant 0 : i32
    %c0_i32_0 = arith.constant 0 : i32
    %c0_i32_1 = arith.constant 0 : i32
    return %c0_i32, %c0_i32_0 : i32, i32
  }
  func.func @transform_9(%arg0: i32) -> (i32, i32) {
    %c0_i32 = arith.constant 0 : i32
    %c0_i32_0 = arith.constant 0 : i32
    %c0_i32_1 = arith.constant 0 : i32
    return %c0_i32, %c0_i32_0 : i32, i32
  }
  func.func @transform_10(%arg0: i32) -> (i32, i32) {
    %c0_i32 = arith.constant 0 : i32
    %c0_i32_0 = arith.constant 0 : i32
    %c0_i32_1 = arith.constant 0 : i32
    return %c0_i32, %c0_i32_0 : i32, i32
  }
  func.func @transform_11(%arg0: i32) -> (i32, i32) {
    %c0_i32 = arith.constant 0 : i32
    %c0_i32_0 = arith.constant 0 : i32
    %c0_i32_1 = arith.constant 0 : i32
    return %c0_i32, %c0_i32_0 : i32, i32
  }
  func.func @transform_12(%arg0: i32) -> (i32, i32) {
    %c0_i32 = arith.constant 0 : i32
    %c0_i32_0 = arith.constant 0 : i32
    %c0_i32_1 = arith.constant 0 : i32
    return %c0_i32, %c0_i32_0 : i32, i32
  }
  func.func @transform_13(%arg0: i32) -> (i32, i32) {
    %c0_i32 = arith.constant 0 : i32
    %c0_i32_0 = arith.constant 0 : i32
    return %arg0, %c0_i32 : i32, i32
  }
}

</mosaic_0001>

<llo_original>
// kernel: tpu_custom_call.1
$region0: #{tpu_custom_call.1}
  #allocation0 [shape = 'u32[]', space=smem, size = 0x4, offset = 0x4, fixed_abs, tag = 'smem constant byte address 0x4 - core index']
  #allocation1 [shape = 'u32[144,128]{1,0:T(1,128)}', space=vmem, size = 0x12000, scoped, tag = 'internal scratch']
  %s0 = inlined_call_operand.vmem [shape: f32[128,208], index: 0, kind: input, shape index: {}]
  %s1 = inlined_call_operand.vmem [shape: f32[128,240], index: 1, kind: input, shape index: {}]
  %s2 = inlined_call_operand.vmem [shape: bf16[208,128], index: 2, kind: input, shape index: {}]
  %s3 = inlined_call_operand.vmem [shape: f32[1,128], index: 3, kind: input, shape index: {}]
  %s4 = inlined_call_operand.vmem [shape: bf16[240,128], index: 4, kind: input, shape index: {}]
  %s5 = inlined_call_operand.vmem [shape: f32[1,128], index: 5, kind: input, shape index: {}]
  %s6 = inlined_call_operand.vmem [shape: bf16[128,128], index: 6, kind: input, shape index: {}]
  %s7 = inlined_call_operand.vmem [shape: bf16[128,128], index: 7, kind: input, shape index: {}]
  %s8 = inlined_call_operand.vmem [shape: f32[1,128], index: 8, kind: input, shape index: {}]
  %s9 = inlined_call_operand.vmem [shape: bf16[128,64], index: 9, kind: input, shape index: {}]
  %s10 = inlined_call_operand.vmem [shape: f32[1,64], index: 10, kind: input, shape index: {}]
  %s11 = inlined_call_operand.vmem [shape: bf16[64,3], index: 11, kind: input, shape index: {}]
  %s12 = inlined_call_operand.vmem [shape: f32[1,3], index: 12, kind: input, shape index: {}]
  %s13 = inlined_call_operand.vmem [shape: f32[128,3], index: 13, kind: output, shape index: {}]
  %s14 = sld [smem:[#allocation0]]
  $region62: #{tpu_custom_call.1} parent=0
    _
  %s16 = ssub.s32 1, %s14
  %s17 = scalar_select 0, %s16, %s14
  // Predicated region
  $region2: #{tpu_custom_call.1} parent=0 // pred_check
    _
  $region3: #{tpu_custom_call.1} parent=0 // pred_check_branch
    %19 = sbr.rel (0) target = $region5
  $region4: #{tpu_custom_call.1} parent=0 // pred_region
    _
  $region5: #{tpu_custom_call.1} parent=0 // pred_fallthru
    _
  // Predicated region
  $region6: #{tpu_custom_call.1} parent=0 // pred_check
    _
  $region7: #{tpu_custom_call.1} parent=0 // pred_check_branch
    %21 = sbr.rel (0) target = $region9
  $region8: #{tpu_custom_call.1} parent=0 // pred_region
    _
  $region9: #{tpu_custom_call.1} parent=0 // pred_fallthru
    _
  // Predicated region
  $region10: #{tpu_custom_call.1} parent=0 // pred_check
    _
  $region11: #{tpu_custom_call.1} parent=0 // pred_check_branch
    %23 = sbr.rel (0) target = $region13
  $region12: #{tpu_custom_call.1} parent=0 // pred_region
    _
  $region13: #{tpu_custom_call.1} parent=0 // pred_fallthru
    _
  // Predicated region
  $region14: #{tpu_custom_call.1} parent=0 // pred_check
    _
  $region15: #{tpu_custom_call.1} parent=0 // pred_check_branch
    %25 = sbr.rel (0) target = $region17
  $region16: #{tpu_custom_call.1} parent=0 // pred_region
    _
  $region17: #{tpu_custom_call.1} parent=0 // pred_fallthru
    _
  // Predicated region
  $region18: #{tpu_custom_call.1} parent=0 // pred_check
    _
  $region19: #{tpu_custom_call.1} parent=0 // pred_check_branch
    %27 = sbr.rel (0) target = $region21
  $region20: #{tpu_custom_call.1} parent=0 // pred_region
    _
  $region21: #{tpu_custom_call.1} parent=0 // pred_fallthru
    _
  // Predicated region
  $region22: #{tpu_custom_call.1} parent=0 // pred_check
    _
  $region23: #{tpu_custom_call.1} parent=0 // pred_check_branch
    %29 = sbr.rel (0) target = $region25
  $region24: #{tpu_custom_call.1} parent=0 // pred_region
    _
  $region25: #{tpu_custom_call.1} parent=0 // pred_fallthru
    _
  // Predicated region
  $region26: #{tpu_custom_call.1} parent=0 // pred_check
    _
  $region27: #{tpu_custom_call.1} parent=0 // pred_check_branch
    %31 = sbr.rel (0) target = $region29
  $region28: #{tpu_custom_call.1} parent=0 // pred_region
    _
  $region29: #{tpu_custom_call.1} parent=0 // pred_fallthru
    _
  // Predicated region
  $region30: #{tpu_custom_call.1} parent=0 // pred_check
    _
  $region31: #{tpu_custom_call.1} parent=0 // pred_check_branch
    %33 = sbr.rel (0) target = $region33
  $region32: #{tpu_custom_call.1} parent=0 // pred_region
    _
  $region33: #{tpu_custom_call.1} parent=0 // pred_fallthru
    _
  // Predicated region
  $region34: #{tpu_custom_call.1} parent=0 // pred_check
    _
  $region35: #{tpu_custom_call.1} parent=0 // pred_check_branch
    %35 = sbr.rel (0) target = $region37
  $region36: #{tpu_custom_call.1} parent=0 // pred_region
    _
  $region37: #{tpu_custom_call.1} parent=0 // pred_fallthru
    _
  // Predicated region
  $region38: #{tpu_custom_call.1} parent=0 // pred_check
    _
  $region39: #{tpu_custom_call.1} parent=0 // pred_check_branch
    %37 = sbr.rel (0) target = $region41
  $region40: #{tpu_custom_call.1} parent=0 // pred_region
    _
  $region41: #{tpu_custom_call.1} parent=0 // pred_fallthru
    _
  // Predicated region
  $region42: #{tpu_custom_call.1} parent=0 // pred_check
    _
  $region43: #{tpu_custom_call.1} parent=0 // pred_check_branch
    %39 = sbr.rel (0) target = $region45
  $region44: #{tpu_custom_call.1} parent=0 // pred_region
    _
  $region45: #{tpu_custom_call.1} parent=0 // pred_fallthru
    _
  // Predicated region
  $region46: #{tpu_custom_call.1} parent=0 // pred_check
    _
  $region47: #{tpu_custom_call.1} parent=0 // pred_check_branch
    %41 = sbr.rel (0) target = $region49
  $region48: #{tpu_custom_call.1} parent=0 // pred_region
    _
  $region49: #{tpu_custom_call.1} parent=0 // pred_fallthru
    _
  // Predicated region
  $region50: #{tpu_custom_call.1} parent=0 // pred_check
    _
  $region51: #{tpu_custom_call.1} parent=0 // pred_check_branch
    %43 = sbr.rel (0) target = $region53
  $region52: #{tpu_custom_call.1} parent=0 // pred_region
    _
  $region53: #{tpu_custom_call.1} parent=0 // pred_fallthru
    _
  %v45 = vld [vmem:[%s0] sm:$0xff]
  %v46 = vld [vmem:[%s0 + $0x8] sm:$0xff]
  %v47 = vld [vmem:[%s0 + $0x10] sm:$0xff]
  %v48 = vld [vmem:[%s0 + $0x18] sm:$0xff]
  %v49 = vld [vmem:[%s0 + $0x20] sm:$0xff]
  %v50 = vld [vmem:[%s0 + $0x28] sm:$0xff]
  %v51 = vld [vmem:[%s0 + $0x30] sm:$0xff]
  %v52 = vld [vmem:[%s0 + $0x38] sm:$0xff]
  %v53 = vld [vmem:[%s0 + $0x40] sm:$0xff]
  %v54 = vld [vmem:[%s0 + $0x48] sm:$0xff]
  %v55 = vld [vmem:[%s0 + $0x50] sm:$0xff]
  %v56 = vld [vmem:[%s0 + $0x58] sm:$0xff]
  %v57 = vld [vmem:[%s0 + $0x60] sm:$0xff]
  %v58 = vld [vmem:[%s0 + $0x68] sm:$0xff]
  %v59 = vld [vmem:[%s0 + $0x70] sm:$0xff]
  %v60 = vld [vmem:[%s0 + $0x78] sm:$0xff]
  %v61 = vld [vmem:[%s0 + $0x80] sm:$0xff]
  %v62 = vld [vmem:[%s0 + $0x88] sm:$0xff]
  %v63 = vld [vmem:[%s0 + $0x90] sm:$0xff]
  %v64 = vld [vmem:[%s0 + $0x98] sm:$0xff]
  %v65 = vld [vmem:[%s0 + $0xa0] sm:$0xff]
  %v66 = vld [vmem:[%s0 + $0xa8] sm:$0xff]
  %v67 = vld [vmem:[%s0 + $0xb0] sm:$0xff]
  %v68 = vld [vmem:[%s0 + $0xb8] sm:$0xff]
  %v69 = vld [vmem:[%s0 + $0xc0] sm:$0xff]
  %v70 = vld [vmem:[%s0 + $0xc8] sm:$0xff]
  %v71 = vld [vmem:[%s0 + $0xd0] sm:$0xff]
  %v72 = vld [vmem:[%s0 + $0xd8] sm:$0xff]
  %v73 = vld [vmem:[%s0 + $0xe0] sm:$0xff]
  %v74 = vld [vmem:[%s0 + $0xe8] sm:$0xff]
  %v75 = vld [vmem:[%s0 + $0xf0] sm:$0xff]
  %v76 = vld [vmem:[%s0 + $0xf8] sm:$0xff]
  %v77 = vpack.c.bf16 %v47, %v45
  %v78 = vpack.c.bf16 %v48, %v46
  %v79 = vpack.c.bf16 %v51, %v49
  %v80 = vpack.c.bf16 %v52, %v50
  %v81 = vpack.c.bf16 %v55, %v53
  %v82 = vpack.c.bf16 %v56, %v54
  %v83 = vpack.c.bf16 %v59, %v57
  %v84 = vpack.c.bf16 %v60, %v58
  %v85 = vpack.c.bf16 %v63, %v61
  %v86 = vpack.c.bf16 %v64, %v62
  %v87 = vpack.c.bf16 %v67, %v65
  %v88 = vpack.c.bf16 %v68, %v66
  %v89 = vpack.c.bf16 %v71, %v69
  %v90 = vpack.c.bf16 %v72, %v70
  %v91 = vpack.c.bf16 %v75, %v73
  %v92 = vpack.c.bf16 %v76, %v74
  %v93 = vld [vmem:[%s1] sm:$0xff]
  %v94 = vld [vmem:[%s1 + $0x8] sm:$0xff]
  %v95 = vld [vmem:[%s1 + $0x10] sm:$0xff]
  %v96 = vld [vmem:[%s1 + $0x18] sm:$0xff]
  %v97 = vld [vmem:[%s1 + $0x20] sm:$0xff]
  %v98 = vld [vmem:[%s1 + $0x28] sm:$0xff]
  %v99 = vld [vmem:[%s1 + $0x30] sm:$0xff]
  %v100 = vld [vmem:[%s1 + $0x38] sm:$0xff]
  %v101 = vld [vmem:[%s1 + $0x40] sm:$0xff]
  %v102 = vld [vmem:[%s1 + $0x48] sm:$0xff]
  %v103 = vld [vmem:[%s1 + $0x50] sm:$0xff]
  %v104 = vld [vmem:[%s1 + $0x58] sm:$0xff]
  %v105 = vld [vmem:[%s1 + $0x60] sm:$0xff]
  %v106 = vld [vmem:[%s1 + $0x68] sm:$0xff]
  %v107 = vld [vmem:[%s1 + $0x70] sm:$0xff]
  %v108 = vld [vmem:[%s1 + $0x78] sm:$0xff]
  %v109 = vld [vmem:[%s1 + $0x80] sm:$0xff]
  %v110 = vld [vmem:[%s1 + $0x88] sm:$0xff]
  %v111 = vld [vmem:[%s1 + $0x90] sm:$0xff]
  %v112 = vld [vmem:[%s1 + $0x98] sm:$0xff]
  %v113 = vld [vmem:[%s1 + $0xa0] sm:$0xff]
  %v114 = vld [vmem:[%s1 + $0xa8] sm:$0xff]
  %v115 = vld [vmem:[%s1 + $0xb0] sm:$0xff]
  %v116 = vld [vmem:[%s1 + $0xb8] sm:$0xff]
  %v117 = vld [vmem:[%s1 + $0xc0] sm:$0xff]
  %v118 = vld [vmem:[%s1 + $0xc8] sm:$0xff]
  %v119 = vld [vmem:[%s1 + $0xd0] sm:$0xff]
  %v120 = vld [vmem:[%s1 + $0xd8] sm:$0xff]
  %v121 = vld [vmem:[%s1 + $0xe0] sm:$0xff]
  %v122 = vld [vmem:[%s1 + $0xe8] sm:$0xff]
  %v123 = vld [vmem:[%s1 + $0xf0] sm:$0xff]
  %v124 = vld [vmem:[%s1 + $0xf8] sm:$0xff]
  %v125 = vpack.c.bf16 %v95, %v93
  %v126 = vpack.c.bf16 %v96, %v94
  %v127 = vpack.c.bf16 %v99, %v97
  %v128 = vpack.c.bf16 %v100, %v98
  %v129 = vpack.c.bf16 %v103, %v101
  %v130 = vpack.c.bf16 %v104, %v102
  %v131 = vpack.c.bf16 %v107, %v105
  %v132 = vpack.c.bf16 %v108, %v106
  %v133 = vpack.c.bf16 %v111, %v109
  %v134 = vpack.c.bf16 %v112, %v110
  %v135 = vpack.c.bf16 %v115, %v113
  %v136 = vpack.c.bf16 %v116, %v114
  %v137 = vpack.c.bf16 %v119, %v117
  %v138 = vpack.c.bf16 %v120, %v118
  %v139 = vpack.c.bf16 %v123, %v121
  %v140 = vpack.c.bf16 %v124, %v122
  %v141 = vld [vmem:[%s2] sm:$0xf]
  %v142 = vld [vmem:[%s2 + $0x4] sm:$0xf]
  %v143 = vld [vmem:[%s2 + $0x8] sm:$0xf]
  %v144 = vld [vmem:[%s2 + $0xc] sm:$0xf]
  %v145 = vld [vmem:[%s2 + $0x10] sm:$0xf]
  %v146 = vld [vmem:[%s2 + $0x14] sm:$0xf]
  %v147 = vld [vmem:[%s2 + $0x18] sm:$0xf]
  %v148 = vld [vmem:[%s2 + $0x1c] sm:$0xf]
  %v149 = vld [vmem:[%s2 + $0x20] sm:$0xf]
  %v150 = vld [vmem:[%s2 + $0x24] sm:$0xf]
  %v151 = vld [vmem:[%s2 + $0x28] sm:$0xf]
  %v152 = vld [vmem:[%s2 + $0x2c] sm:$0xf]
  %v153 = vld [vmem:[%s2 + $0x30] sm:$0xf]
  %v154 = vld [vmem:[%s2 + $0x34] sm:$0xf]
  %v155 = vld [vmem:[%s2 + $0x38] sm:$0xf]
  %v156 = vld [vmem:[%s2 + $0x3c] sm:$0xf]
  %v157 = vld [vmem:[%s2 + $0x40] sm:$0xf]
  %v158 = vld [vmem:[%s2 + $0x44] sm:$0xf]
  %v159 = vld [vmem:[%s2 + $0x48] sm:$0xf]
  %v160 = vld [vmem:[%s2 + $0x4c] sm:$0xf]
  %v161 = vld [vmem:[%s2 + $0x50] sm:$0xf]
  %v162 = vld [vmem:[%s2 + $0x54] sm:$0xf]
  %v163 = vld [vmem:[%s2 + $0x58] sm:$0xf]
  %v164 = vld [vmem:[%s2 + $0x5c] sm:$0xf]
  %v165 = vld [vmem:[%s2 + $0x60] sm:$0xf]
  %v166 = vld [vmem:[%s2 + $0x64] sm:$0xf]
  %v167 = vld [vmem:[%s3] sm:$0x1]
  %v169 = vlaneseq
  %v170 = vshrl.u32 %v169, 7
  %v171 = vsub.s32 0, %v170
  %v172 = vrot.slane %v167, %v171
  %v200 = vunpack.c.l.b16 %v141
  %v201 = vunpack.c.l.b16 %v142
  %v202 = vunpack.c.l.b16 %v143
  %v203 = vunpack.c.l.b16 %v144
  %v204 = vunpack.c.l.b16 %v145
  %v205 = vunpack.c.l.b16 %v146
  %v206 = vunpack.c.l.b16 %v147
  %v207 = vunpack.c.l.b16 %v148
  %v208 = vunpack.c.l.b16 %v149
  %v209 = vunpack.c.l.b16 %v150
  %v210 = vunpack.c.l.b16 %v151
  %v211 = vunpack.c.l.b16 %v152
  %v212 = vunpack.c.l.b16 %v153
  %v213 = vunpack.c.l.b16 %v154
  %v214 = vunpack.c.l.b16 %v155
  %v215 = vunpack.c.l.b16 %v156
  %v216 = vunpack.c.l.b16 %v157
  %v217 = vunpack.c.l.b16 %v158
  %v218 = vunpack.c.l.b16 %v159
  %v219 = vunpack.c.l.b16 %v160
  %v220 = vunpack.c.l.b16 %v161
  %v221 = vunpack.c.l.b16 %v162
  %v222 = vunpack.c.l.b16 %v163
  %v223 = vunpack.c.l.b16 %v164
  %v224 = vunpack.c.l.b16 %v165
  %v225 = vunpack.c.l.b16 %v166
  %v226 = vpack.c.b16 %v201, %v200
  %v227 = vpack.c.b16 %v203, %v202
  %v228 = vpack.c.b16 %v205, %v204
  %v229 = vpack.c.b16 %v207, %v206
  %v230 = vpack.c.b16 %v209, %v208
  %v231 = vpack.c.b16 %v211, %v210
  %v232 = vpack.c.b16 %v213, %v212
  %v233 = vpack.c.b16 %v215, %v214
  %v234 = vpack.c.b16 %v217, %v216
  %v235 = vpack.c.b16 %v219, %v218
  %v236 = vpack.c.b16 %v221, %v220
  %v237 = vpack.c.b16 %v223, %v222
  %v238 = vpack.c.b16 %v225, %v224
  %vm252 = vcmask 654336
  %v254 = vsel %vm252, %v78, 0
  %v257 = vsel %vm252, %v80, 0
  %v260 = vsel %vm252, %v82, 0
  %v263 = vsel %vm252, %v84, 0
  %v266 = vsel %vm252, %v86, 0
  %v269 = vsel %vm252, %v88, 0
  %v272 = vsel %vm252, %v90, 0
  %v275 = vsel %vm252, %v92, 0
  %277 = vmatprep.subr.bf16.mxu0 0
  %278 = vmatpush1.bf16.msra.mxu0 %v233
  %279 = vmatprep.subr.bf16.mxu0 0
  %280 = vmatpush1.bf16.msra.mxu0 %v232
  %281 = vmatprep.subr.bf16.mxu0 0
  %282 = vmatpush1.bf16.msra.mxu0 %v231
  %283 = vmatprep.subr.bf16.mxu0 0
  %284 = vmatpush1.bf16.msra.mxu0 %v230
  %285 = vmatprep.subr.bf16.mxu0 0
  %286 = vmatpush1.bf16.msra.mxu0 %v229
  %287 = vmatprep.subr.bf16.mxu0 0
  %288 = vmatpush1.bf16.msra.mxu0 %v228
  %289 = vmatprep.subr.bf16.mxu0 0
  %290 = vmatpush1.bf16.msra.mxu0 %v227
  %291 = vmatprep.subr.bf16.mxu0 0
  %292 = vmatpush1.bf16.msra.mxu0 %v226
  %293 = vmatprep.subr.bf16.mxu0 0
  %294 = vmatpush2.bf16.msra.mxu0 0
  %295 = vmatprep.subr.bf16.mxu0 0
  %296 = vmatpush2.bf16.msra.mxu0 0
  %297 = vmatprep.subr.bf16.mxu0 0
  %298 = vmatpush2.bf16.msra.mxu0 0
  %299 = vmatprep.subr.bf16.mxu0 0
  %300 = vmatpush2.bf16.msra.mxu0 %v238
  %301 = vmatprep.subr.bf16.mxu0 0
  %302 = vmatpush2.bf16.msra.mxu0 %v237
  %303 = vmatprep.subr.bf16.mxu0 0
  %304 = vmatpush2.bf16.msra.mxu0 %v236
  %305 = vmatprep.subr.bf16.mxu0 0
  %306 = vmatpush2.bf16.msra.mxu0 %v235
  %307 = vmatprep.subr.bf16.mxu0 0
  %308 = vmatpush2.bf16.msra.mxu0 %v234
  %309 = vmatprep.mubr.bf16.mxu0 %v254
  %310 = vmatmul.mubr.bf16.gmra.mxu0 %v77
  %v311 = vpop.f32.mrf.mxu0
  %v312 = vadd.f32 %v172, %v311
  %v313 = vpop.f32.mrf.mxu0
  %v314 = vpop.f32.mrf.mxu0
  %v315 = vadd.f32 %v172, %v314
  %v316 = vpop.f32.mrf.mxu0
  %317 = vmatprep.mubr.bf16.mxu0 %v257
  %318 = vmatmul.mubr.bf16.gmra.mxu0 %v79
  %v319 = vpop.f32.mrf.mxu0
  %v320 = vadd.f32 %v172, %v319
  %v321 = vpop.f32.mrf.mxu0
  %v322 = vpop.f32.mrf.mxu0
  %v323 = vadd.f32 %v172, %v322
  %v324 = vpop.f32.mrf.mxu0
  %325 = vmatprep.mubr.bf16.mxu0 %v260
  %326 = vmatmul.mubr.bf16.gmra.mxu0 %v81
  %v327 = vpop.f32.mrf.mxu0
  %v328 = vadd.f32 %v172, %v327
  %v329 = vpop.f32.mrf.mxu0
  %v330 = vpop.f32.mrf.mxu0
  %v331 = vadd.f32 %v172, %v330
  %v332 = vpop.f32.mrf.mxu0
  %333 = vmatprep.mubr.bf16.mxu0 %v263
  %334 = vmatmul.mubr.bf16.gmra.mxu0 %v83
  %v335 = vpop.f32.mrf.mxu0
  %v336 = vadd.f32 %v172, %v335
  %v337 = vpop.f32.mrf.mxu0
  %v338 = vpop.f32.mrf.mxu0
  %v339 = vadd.f32 %v172, %v338
  %v340 = vpop.f32.mrf.mxu0
  %341 = vmatprep.mubr.bf16.mxu0 %v266
  %342 = vmatmul.mubr.bf16.gmra.mxu0 %v85
  %v343 = vpop.f32.mrf.mxu0
  %v344 = vadd.f32 %v172, %v343
  %v345 = vpop.f32.mrf.mxu0
  %v346 = vpop.f32.mrf.mxu0
  %v347 = vadd.f32 %v172, %v346
  %v348 = vpop.f32.mrf.mxu0
  %349 = vmatprep.mubr.bf16.mxu0 %v269
  %350 = vmatmul.mubr.bf16.gmra.mxu0 %v87
  %v351 = vpop.f32.mrf.mxu0
  %v352 = vadd.f32 %v172, %v351
  %v353 = vpop.f32.mrf.mxu0
  %v354 = vpop.f32.mrf.mxu0
  %v355 = vadd.f32 %v172, %v354
  %v356 = vpop.f32.mrf.mxu0
  %357 = vmatprep.mubr.bf16.mxu0 %v272
  %358 = vmatmul.mubr.bf16.gmra.mxu0 %v89
  %v359 = vpop.f32.mrf.mxu0
  %v360 = vadd.f32 %v172, %v359
  %v361 = vpop.f32.mrf.mxu0
  %v362 = vpop.f32.mrf.mxu0
  %v363 = vadd.f32 %v172, %v362
  %v364 = vpop.f32.mrf.mxu0
  %365 = vmatprep.mubr.bf16.mxu0 %v275
  %366 = vmatmul.mubr.bf16.gmra.mxu0 %v91
  %v367 = vpop.f32.mrf.mxu0
  %v368 = vadd.f32 %v172, %v367
  %v369 = vpop.f32.mrf.mxu0
  %v370 = vpop.f32.mrf.mxu0
  %v371 = vadd.f32 %v172, %v370
  %v372 = vpop.f32.mrf.mxu0
  %373 = vdwg.mxu0
  %v374 = vld [vmem:[%s4] sm:$0xf]
  %v375 = vld [vmem:[%s4 + $0x4] sm:$0xf]
  %v376 = vld [vmem:[%s4 + $0x8] sm:$0xf]
  %v377 = vld [vmem:[%s4 + $0xc] sm:$0xf]
  %v378 = vld [vmem:[%s4 + $0x10] sm:$0xf]
  %v379 = vld [vmem:[%s4 + $0x14] sm:$0xf]
  %v380 = vld [vmem:[%s4 + $0x18] sm:$0xf]
  %v381 = vld [vmem:[%s4 + $0x1c] sm:$0xf]
  %v382 = vld [vmem:[%s4 + $0x20] sm:$0xf]
  %v383 = vld [vmem:[%s4 + $0x24] sm:$0xf]
  %v384 = vld [vmem:[%s4 + $0x28] sm:$0xf]
  %v385 = vld [vmem:[%s4 + $0x2c] sm:$0xf]
  %v386 = vld [vmem:[%s4 + $0x30] sm:$0xf]
  %v387 = vld [vmem:[%s4 + $0x34] sm:$0xf]
  %v388 = vld [vmem:[%s4 + $0x38] sm:$0xf]
  %v389 = vld [vmem:[%s4 + $0x3c] sm:$0xf]
  %v390 = vld [vmem:[%s4 + $0x40] sm:$0xf]
  %v391 = vld [vmem:[%s4 + $0x44] sm:$0xf]
  %v392 = vld [vmem:[%s4 + $0x48] sm:$0xf]
  %v393 = vld [vmem:[%s4 + $0x4c] sm:$0xf]
  %v394 = vld [vmem:[%s4 + $0x50] sm:$0xf]
  %v395 = vld [vmem:[%s4 + $0x54] sm:$0xf]
  %v396 = vld [vmem:[%s4 + $0x58] sm:$0xf]
  %v397 = vld [vmem:[%s4 + $0x5c] sm:$0xf]
  %v398 = vld [vmem:[%s4 + $0x60] sm:$0xf]
  %v399 = vld [vmem:[%s4 + $0x64] sm:$0xf]
  %v400 = vld [vmem:[%s4 + $0x68] sm:$0xf]
  %v401 = vld [vmem:[%s4 + $0x6c] sm:$0xf]
  %v402 = vld [vmem:[%s4 + $0x70] sm:$0xf]
  %v403 = vld [vmem:[%s4 + $0x74] sm:$0xf]
  %v404 = vld [vmem:[%s5] sm:$0x1]
  %v406 = vlaneseq
  %v407 = vshrl.u32 %v406, 7
  %v408 = vsub.s32 0, %v407
  %v409 = vrot.slane %v404, %v408
  %v441 = vunpack.c.l.b16 %v374
  %v442 = vunpack.c.l.b16 %v375
  %v443 = vunpack.c.l.b16 %v376
  %v444 = vunpack.c.l.b16 %v377
  %v445 = vunpack.c.l.b16 %v378
  %v446 = vunpack.c.l.b16 %v379
  %v447 = vunpack.c.l.b16 %v380
  %v448 = vunpack.c.l.b16 %v381
  %v449 = vunpack.c.l.b16 %v382
  %v450 = vunpack.c.l.b16 %v383
  %v451 = vunpack.c.l.b16 %v384
  %v452 = vunpack.c.l.b16 %v385
  %v453 = vunpack.c.l.b16 %v386
  %v454 = vunpack.c.l.b16 %v387
  %v455 = vunpack.c.l.b16 %v388
  %v456 = vunpack.c.l.b16 %v389
  %v457 = vunpack.c.l.b16 %v390
  %v458 = vunpack.c.l.b16 %v391
  %v459 = vunpack.c.l.b16 %v392
  %v460 = vunpack.c.l.b16 %v393
  %v461 = vunpack.c.l.b16 %v394
  %v462 = vunpack.c.l.b16 %v395
  %v463 = vunpack.c.l.b16 %v396
  %v464 = vunpack.c.l.b16 %v397
  %v465 = vunpack.c.l.b16 %v398
  %v466 = vunpack.c.l.b16 %v399
  %v467 = vunpack.c.l.b16 %v400
  %v468 = vunpack.c.l.b16 %v401
  %v469 = vunpack.c.l.b16 %v402
  %v470 = vunpack.c.l.b16 %v403
  %v471 = vpack.c.b16 %v442, %v441
  %v472 = vpack.c.b16 %v444, %v443
  %v473 = vpack.c.b16 %v446, %v445
  %v474 = vpack.c.b16 %v448, %v447
  %v475 = vpack.c.b16 %v450, %v449
  %v476 = vpack.c.b16 %v452, %v451
  %v477 = vpack.c.b16 %v454, %v453
  %v478 = vpack.c.b16 %v456, %v455
  %v479 = vpack.c.b16 %v458, %v457
  %v480 = vpack.c.b16 %v460, %v459
  %v481 = vpack.c.b16 %v462, %v461
  %v482 = vpack.c.b16 %v464, %v463
  %v483 = vpack.c.b16 %v466, %v465
  %v484 = vpack.c.b16 %v468, %v467
  %v485 = vpack.c.b16 %v470, %v469
  %vm501 = vcmask 916480
  %v503 = vsel %vm501, %v126, 0
  %v506 = vsel %vm501, %v128, 0
  %v509 = vsel %vm501, %v130, 0
  %v512 = vsel %vm501, %v132, 0
  %v515 = vsel %vm501, %v134, 0
  %v518 = vsel %vm501, %v136, 0
  %v521 = vsel %vm501, %v138, 0
  %v524 = vsel %vm501, %v140, 0
  %526 = vmatprep.subr.bf16.mxu0 0
  %527 = vmatpush1.bf16.msra.mxu0 %v478
  %528 = vmatprep.subr.bf16.mxu0 0
  %529 = vmatpush1.bf16.msra.mxu0 %v477
  %530 = vmatprep.subr.bf16.mxu0 0
  %531 = vmatpush1.bf16.msra.mxu0 %v476
  %532 = vmatprep.subr.bf16.mxu0 0
  %533 = vmatpush1.bf16.msra.mxu0 %v475
  %534 = vmatprep.subr.bf16.mxu0 0
  %535 = vmatpush1.bf16.msra.mxu0 %v474
  %536 = vmatprep.subr.bf16.mxu0 0
  %537 = vmatpush1.bf16.msra.mxu0 %v473
  %538 = vmatprep.subr.bf16.mxu0 0
  %539 = vmatpush1.bf16.msra.mxu0 %v472
  %540 = vmatprep.subr.bf16.mxu0 0
  %541 = vmatpush1.bf16.msra.mxu0 %v471
  %542 = vmatprep.subr.bf16.mxu0 0
  %543 = vmatpush2.bf16.msra.mxu0 0
  %544 = vmatprep.subr.bf16.mxu0 0
  %545 = vmatpush2.bf16.msra.mxu0 %v485
  %546 = vmatprep.subr.bf16.mxu0 0
  %547 = vmatpush2.bf16.msra.mxu0 %v484
  %548 = vmatprep.subr.bf16.mxu0 0
  %549 = vmatpush2.bf16.msra.mxu0 %v483
  %550 = vmatprep.subr.bf16.mxu0 0
  %551 = vmatpush2.bf16.msra.mxu0 %v482
  %552 = vmatprep.subr.bf16.mxu0 0
  %553 = vmatpush2.bf16.msra.mxu0 %v481
  %554 = vmatprep.subr.bf16.mxu0 0
  %555 = vmatpush2.bf16.msra.mxu0 %v480
  %556 = vmatprep.subr.bf16.mxu0 0
  %557 = vmatpush2.bf16.msra.mxu0 %v479
  %558 = vmatprep.mubr.bf16.mxu0 %v503
  %559 = vmatmul.mubr.bf16.gmra.mxu0 %v125
  %v560 = vpop.f32.mrf.mxu0
  %v561 = vadd.f32 %v409, %v560
  %v562 = vpop.f32.mrf.mxu0
  %v563 = vpop.f32.mrf.mxu0
  %v564 = vadd.f32 %v409, %v563
  %v565 = vpop.f32.mrf.mxu0
  %566 = vmatprep.mubr.bf16.mxu0 %v506
  %567 = vmatmul.mubr.bf16.gmra.mxu0 %v127
  %v568 = vpop.f32.mrf.mxu0
  %v569 = vadd.f32 %v409, %v568
  %v570 = vpop.f32.mrf.mxu0
  %v571 = vpop.f32.mrf.mxu0
  %v572 = vadd.f32 %v409, %v571
  %v573 = vpop.f32.mrf.mxu0
  %574 = vmatprep.mubr.bf16.mxu0 %v509
  %575 = vmatmul.mubr.bf16.gmra.mxu0 %v129
  %v576 = vpop.f32.mrf.mxu0
  %v577 = vadd.f32 %v409, %v576
  %v578 = vpop.f32.mrf.mxu0
  %v579 = vpop.f32.mrf.mxu0
  %v580 = vadd.f32 %v409, %v579
  %v581 = vpop.f32.mrf.mxu0
  %582 = vmatprep.mubr.bf16.mxu0 %v512
  %583 = vmatmul.mubr.bf16.gmra.mxu0 %v131
  %v584 = vpop.f32.mrf.mxu0
  %v585 = vadd.f32 %v409, %v584
  %v586 = vpop.f32.mrf.mxu0
  %v587 = vpop.f32.mrf.mxu0
  %v588 = vadd.f32 %v409, %v587
  %v589 = vpop.f32.mrf.mxu0
  %590 = vmatprep.mubr.bf16.mxu0 %v515
  %591 = vmatmul.mubr.bf16.gmra.mxu0 %v133
  %v592 = vpop.f32.mrf.mxu0
  %v593 = vadd.f32 %v409, %v592
  %v594 = vpop.f32.mrf.mxu0
  %v595 = vpop.f32.mrf.mxu0
  %v596 = vadd.f32 %v409, %v595
  %v597 = vpop.f32.mrf.mxu0
  %598 = vmatprep.mubr.bf16.mxu0 %v518
  %599 = vmatmul.mubr.bf16.gmra.mxu0 %v135
  %v600 = vpop.f32.mrf.mxu0
  %v601 = vadd.f32 %v409, %v600
  %v602 = vpop.f32.mrf.mxu0
  %v603 = vpop.f32.mrf.mxu0
  %v604 = vadd.f32 %v409, %v603
  %v605 = vpop.f32.mrf.mxu0
  %606 = vmatprep.mubr.bf16.mxu0 %v521
  %607 = vmatmul.mubr.bf16.gmra.mxu0 %v137
  %v608 = vpop.f32.mrf.mxu0
  %v609 = vadd.f32 %v409, %v608
  %v610 = vpop.f32.mrf.mxu0
  %v611 = vpop.f32.mrf.mxu0
  %v612 = vadd.f32 %v409, %v611
  %v613 = vpop.f32.mrf.mxu0
  %614 = vmatprep.mubr.bf16.mxu0 %v524
  %615 = vmatmul.mubr.bf16.gmra.mxu0 %v139
  %v616 = vpop.f32.mrf.mxu0
  %v617 = vadd.f32 %v409, %v616
  %v618 = vpop.f32.mrf.mxu0
  %v619 = vpop.f32.mrf.mxu0
  %v620 = vadd.f32 %v409, %v619
  %v621 = vpop.f32.mrf.mxu0
  %622 = vdwg.mxu0
  %v623 = vmax.f32 %v312, 0.0
  %v624 = vmax.f32 %v315, 0.0
  %v625 = vmax.f32 %v320, 0.0
  %v626 = vmax.f32 %v323, 0.0
  %v627 = vmax.f32 %v328, 0.0
  %v628 = vmax.f32 %v331, 0.0
  %v629 = vmax.f32 %v336, 0.0
  %v630 = vmax.f32 %v339, 0.0
  %v631 = vmax.f32 %v344, 0.0
  %v632 = vmax.f32 %v347, 0.0
  %v633 = vmax.f32 %v352, 0.0
  %v634 = vmax.f32 %v355, 0.0
  %v635 = vmax.f32 %v360, 0.0
  %v636 = vmax.f32 %v363, 0.0
  %v637 = vmax.f32 %v368, 0.0
  %v638 = vmax.f32 %v371, 0.0
  %v639 = vpack.c.bf16 %v624, %v623
  %v640 = vpack.c.bf16 %v626, %v625
  %v641 = vpack.c.bf16 %v628, %v627
  %v642 = vpack.c.bf16 %v630, %v629
  %v643 = vpack.c.bf16 %v632, %v631
  %v644 = vpack.c.bf16 %v634, %v633
  %v645 = vpack.c.bf16 %v636, %v635
  %v646 = vpack.c.bf16 %v638, %v637
  %v647 = vmax.f32 %v561, 0.0
  %v648 = vmax.f32 %v564, 0.0
  %v649 = vmax.f32 %v569, 0.0
  %v650 = vmax.f32 %v572, 0.0
  %v651 = vmax.f32 %v577, 0.0
  %v652 = vmax.f32 %v580, 0.0
  %v653 = vmax.f32 %v585, 0.0
  %v654 = vmax.f32 %v588, 0.0
  %v655 = vmax.f32 %v593, 0.0
  %v656 = vmax.f32 %v596, 0.0
  %v657 = vmax.f32 %v601, 0.0
  %v658 = vmax.f32 %v604, 0.0
  %v659 = vmax.f32 %v609, 0.0
  %v660 = vmax.f32 %v612, 0.0
  %v661 = vmax.f32 %v617, 0.0
  %v662 = vmax.f32 %v620, 0.0
  %v663 = vpack.c.bf16 %v648, %v647
  %v664 = vpack.c.bf16 %v650, %v649
  %v665 = vpack.c.bf16 %v652, %v651
  %v666 = vpack.c.bf16 %v654, %v653
  %v667 = vpack.c.bf16 %v656, %v655
  %v668 = vpack.c.bf16 %v658, %v657
  %v669 = vpack.c.bf16 %v660, %v659
  %v670 = vpack.c.bf16 %v662, %v661
  %v671 = vld [vmem:[%s6] sm:$0xf]
  %v672 = vld [vmem:[%s6 + $0x4] sm:$0xf]
  %v673 = vld [vmem:[%s6 + $0x8] sm:$0xf]
  %v674 = vld [vmem:[%s6 + $0xc] sm:$0xf]
  %v675 = vld [vmem:[%s6 + $0x10] sm:$0xf]
  %v676 = vld [vmem:[%s6 + $0x14] sm:$0xf]
  %v677 = vld [vmem:[%s6 + $0x18] sm:$0xf]
  %v678 = vld [vmem:[%s6 + $0x1c] sm:$0xf]
  %v679 = vld [vmem:[%s6 + $0x20] sm:$0xf]
  %v680 = vld [vmem:[%s6 + $0x24] sm:$0xf]
  %v681 = vld [vmem:[%s6 + $0x28] sm:$0xf]
  %v682 = vld [vmem:[%s6 + $0x2c] sm:$0xf]
  %v683 = vld [vmem:[%s6 + $0x30] sm:$0xf]
  %v684 = vld [vmem:[%s6 + $0x34] sm:$0xf]
  %v685 = vld [vmem:[%s6 + $0x38] sm:$0xf]
  %v686 = vld [vmem:[%s6 + $0x3c] sm:$0xf]
  %v687 = vld [vmem:[%s7] sm:$0xf]
  %v688 = vld [vmem:[%s7 + $0x4] sm:$0xf]
  %v689 = vld [vmem:[%s7 + $0x8] sm:$0xf]
  %v690 = vld [vmem:[%s7 + $0xc] sm:$0xf]
  %v691 = vld [vmem:[%s7 + $0x10] sm:$0xf]
  %v692 = vld [vmem:[%s7 + $0x14] sm:$0xf]
  %v693 = vld [vmem:[%s7 + $0x18] sm:$0xf]
  %v694 = vld [vmem:[%s7 + $0x1c] sm:$0xf]
  %v695 = vld [vmem:[%s7 + $0x20] sm:$0xf]
  %v696 = vld [vmem:[%s7 + $0x24] sm:$0xf]
  %v697 = vld [vmem:[%s7 + $0x28] sm:$0xf]
  %v698 = vld [vmem:[%s7 + $0x2c] sm:$0xf]
  %v699 = vld [vmem:[%s7 + $0x30] sm:$0xf]
  %v700 = vld [vmem:[%s7 + $0x34] sm:$0xf]
  %v701 = vld [vmem:[%s7 + $0x38] sm:$0xf]
  %v702 = vld [vmem:[%s7 + $0x3c] sm:$0xf]
  %v719 = vunpack.c.l.b16 %v687
  %v720 = vunpack.c.l.b16 %v688
  %v721 = vunpack.c.l.b16 %v689
  %v722 = vunpack.c.l.b16 %v690
  %v723 = vunpack.c.l.b16 %v691
  %v724 = vunpack.c.l.b16 %v692
  %v725 = vunpack.c.l.b16 %v693
  %v726 = vunpack.c.l.b16 %v694
  %v727 = vunpack.c.l.b16 %v695
  %v728 = vunpack.c.l.b16 %v696
  %v729 = vunpack.c.l.b16 %v697
  %v730 = vunpack.c.l.b16 %v698
  %v731 = vunpack.c.l.b16 %v699
  %v732 = vunpack.c.l.b16 %v700
  %v733 = vunpack.c.l.b16 %v701
  %v734 = vunpack.c.l.b16 %v702
  %v735 = vpack.c.b16 %v720, %v719
  %v736 = vpack.c.b16 %v722, %v721
  %v737 = vpack.c.b16 %v724, %v723
  %v738 = vpack.c.b16 %v726, %v725
  %v739 = vpack.c.b16 %v728, %v727
  %v740 = vpack.c.b16 %v730, %v729
  %v741 = vpack.c.b16 %v732, %v731
  %v742 = vpack.c.b16 %v734, %v733
  %751 = vmatprep.subr.bf16.mxu0 0
  %752 = vmatpush1.bf16.msra.mxu0 %v742
  %753 = vmatprep.subr.bf16.mxu0 0
  %754 = vmatpush1.bf16.msra.mxu0 %v741
  %755 = vmatprep.subr.bf16.mxu0 0
  %756 = vmatpush1.bf16.msra.mxu0 %v740
  %757 = vmatprep.subr.bf16.mxu0 0
  %758 = vmatpush1.bf16.msra.mxu0 %v739
  %759 = vmatprep.subr.bf16.mxu0 0
  %760 = vmatpush1.bf16.msra.mxu0 %v738
  %761 = vmatprep.subr.bf16.mxu0 0
  %762 = vmatpush1.bf16.msra.mxu0 %v737
  %763 = vmatprep.subr.bf16.mxu0 0
  %764 = vmatpush1.bf16.msra.mxu0 %v736
  %765 = vmatprep.subr.bf16.mxu0 0
  %766 = vmatpush1.bf16.msra.mxu0 %v735
  %767 = vmatprep.subr.bf16.mxu0 0
  %768 = vmatpush2.bf16.msra.mxu0 0
  %769 = vmatprep.subr.bf16.mxu0 0
  %770 = vmatpush2.bf16.msra.mxu0 0
  %771 = vmatprep.subr.bf16.mxu0 0
  %772 = vmatpush2.bf16.msra.mxu0 0
  %773 = vmatprep.subr.bf16.mxu0 0
  %774 = vmatpush2.bf16.msra.mxu0 0
  %775 = vmatprep.subr.bf16.mxu0 0
  %776 = vmatpush2.bf16.msra.mxu0 0
  %777 = vmatprep.subr.bf16.mxu0 0
  %778 = vmatpush2.bf16.msra.mxu0 0
  %779 = vmatprep.subr.bf16.mxu0 0
  %780 = vmatpush2.bf16.msra.mxu0 0
  %781 = vmatprep.subr.bf16.mxu0 0
  %782 = vmatpush2.bf16.msra.mxu0 0
  %783 = vmatprep.mubr.bf16.mxu0 0
  %784 = vmatmul.mubr.bf16.gmra.mxu0 %v663
  %v785 = vpop.f32.mrf.mxu0
  %v786 = vadd.f32 0.0, %v785
  %v787 = vpop.f32.mrf.mxu0
  %v788 = vpop.f32.mrf.mxu0
  %v789 = vadd.f32 0.0, %v788
  %v790 = vpop.f32.mrf.mxu0
  %791 = vmatprep.mubr.bf16.mxu0 0
  %792 = vmatmul.mubr.bf16.gmra.mxu0 %v664
  %v793 = vpop.f32.mrf.mxu0
  %v794 = vadd.f32 0.0, %v793
  %v795 = vpop.f32.mrf.mxu0
  %v796 = vpop.f32.mrf.mxu0
  %v797 = vadd.f32 0.0, %v796
  %v798 = vpop.f32.mrf.mxu0
  %799 = vmatprep.mubr.bf16.mxu0 0
  %800 = vmatmul.mubr.bf16.gmra.mxu0 %v665
  %v801 = vpop.f32.mrf.mxu0
  %v802 = vadd.f32 0.0, %v801
  %v803 = vpop.f32.mrf.mxu0
  %v804 = vpop.f32.mrf.mxu0
  %v805 = vadd.f32 0.0, %v804
  %v806 = vpop.f32.mrf.mxu0
  %807 = vmatprep.mubr.bf16.mxu0 0
  %808 = vmatmul.mubr.bf16.gmra.mxu0 %v666
  %v809 = vpop.f32.mrf.mxu0
  %v810 = vadd.f32 0.0, %v809
  %v811 = vpop.f32.mrf.mxu0
  %v812 = vpop.f32.mrf.mxu0
  %v813 = vadd.f32 0.0, %v812
  %v814 = vpop.f32.mrf.mxu0
  %815 = vmatprep.mubr.bf16.mxu0 0
  %816 = vmatmul.mubr.bf16.gmra.mxu0 %v667
  %v817 = vpop.f32.mrf.mxu0
  %v818 = vadd.f32 0.0, %v817
  %v819 = vpop.f32.mrf.mxu0
  %v820 = vpop.f32.mrf.mxu0
  %v821 = vadd.f32 0.0, %v820
  %v822 = vpop.f32.mrf.mxu0
  %823 = vmatprep.mubr.bf16.mxu0 0
  %824 = vmatmul.mubr.bf16.gmra.mxu0 %v668
  %v825 = vpop.f32.mrf.mxu0
  %v826 = vadd.f32 0.0, %v825
  %v827 = vpop.f32.mrf.mxu0
  %v828 = vpop.f32.mrf.mxu0
  %v829 = vadd.f32 0.0, %v828
  %v830 = vpop.f32.mrf.mxu0
  %831 = vmatprep.mubr.bf16.mxu0 0
  %832 = vmatmul.mubr.bf16.gmra.mxu0 %v669
  %v833 = vpop.f32.mrf.mxu0
  %v834 = vadd.f32 0.0, %v833
  %v835 = vpop.f32.mrf.mxu0
  %v836 = vpop.f32.mrf.mxu0
  %v837 = vadd.f32 0.0, %v836
  %v838 = vpop.f32.mrf.mxu0
  %839 = vmatprep.mubr.bf16.mxu0 0
  %840 = vmatmul.mubr.bf16.gmra.mxu0 %v670
  %v841 = vpop.f32.mrf.mxu0
  %v842 = vadd.f32 0.0, %v841
  %v843 = vpop.f32.mrf.mxu0
  %v844 = vpop.f32.mrf.mxu0
  %v845 = vadd.f32 0.0, %v844
  %v846 = vpop.f32.mrf.mxu0
  %847 = vdwg.mxu0
  %v864 = vunpack.c.l.b16 %v671
  %v865 = vunpack.c.l.b16 %v672
  %v866 = vunpack.c.l.b16 %v673
  %v867 = vunpack.c.l.b16 %v674
  %v868 = vunpack.c.l.b16 %v675
  %v869 = vunpack.c.l.b16 %v676
  %v870 = vunpack.c.l.b16 %v677
  %v871 = vunpack.c.l.b16 %v678
  %v872 = vunpack.c.l.b16 %v679
  %v873 = vunpack.c.l.b16 %v680
  %v874 = vunpack.c.l.b16 %v681
  %v875 = vunpack.c.l.b16 %v682
  %v876 = vunpack.c.l.b16 %v683
  %v877 = vunpack.c.l.b16 %v684
  %v878 = vunpack.c.l.b16 %v685
  %v879 = vunpack.c.l.b16 %v686
  %v880 = vpack.c.b16 %v865, %v864
  %v881 = vpack.c.b16 %v867, %v866
  %v882 = vpack.c.b16 %v869, %v868
  %v883 = vpack.c.b16 %v871, %v870
  %v884 = vpack.c.b16 %v873, %v872
  %v885 = vpack.c.b16 %v875, %v874
  %v886 = vpack.c.b16 %v877, %v876
  %v887 = vpack.c.b16 %v879, %v878
  %896 = vmatprep.subr.bf16.mxu0 0
  %897 = vmatpush1.bf16.msra.mxu0 %v887
  %898 = vmatprep.subr.bf16.mxu0 0
  %899 = vmatpush1.bf16.msra.mxu0 %v886
  %900 = vmatprep.subr.bf16.mxu0 0
  %901 = vmatpush1.bf16.msra.mxu0 %v885
  %902 = vmatprep.subr.bf16.mxu0 0
  %903 = vmatpush1.bf16.msra.mxu0 %v884
  %904 = vmatprep.subr.bf16.mxu0 0
  %905 = vmatpush1.bf16.msra.mxu0 %v883
  %906 = vmatprep.subr.bf16.mxu0 0
  %907 = vmatpush1.bf16.msra.mxu0 %v882
  %908 = vmatprep.subr.bf16.mxu0 0
  %909 = vmatpush1.bf16.msra.mxu0 %v881
  %910 = vmatprep.subr.bf16.mxu0 0
  %911 = vmatpush1.bf16.msra.mxu0 %v880
  %912 = vmatprep.subr.bf16.mxu0 0
  %913 = vmatpush2.bf16.msra.mxu0 0
  %914 = vmatprep.subr.bf16.mxu0 0
  %915 = vmatpush2.bf16.msra.mxu0 0
  %916 = vmatprep.subr.bf16.mxu0 0
  %917 = vmatpush2.bf16.msra.mxu0 0
  %918 = vmatprep.subr.bf16.mxu0 0
  %919 = vmatpush2.bf16.msra.mxu0 0
  %920 = vmatprep.subr.bf16.mxu0 0
  %921 = vmatpush2.bf16.msra.mxu0 0
  %922 = vmatprep.subr.bf16.mxu0 0
  %923 = vmatpush2.bf16.msra.mxu0 0
  %924 = vmatprep.subr.bf16.mxu0 0
  %925 = vmatpush2.bf16.msra.mxu0 0
  %926 = vmatprep.subr.bf16.mxu0 0
  %927 = vmatpush2.bf16.msra.mxu0 0
  %928 = vmatprep.mubr.bf16.mxu0 0
  %929 = vmatmul.mubr.bf16.gmra.mxu0 %v639
  %v930 = vpop.f32.mrf.mxu0
  %v931 = vadd.f32 %v786, %v930
  %v932 = vpop.f32.mrf.mxu0
  %v933 = vpop.f32.mrf.mxu0
  %v934 = vadd.f32 %v789, %v933
  %v935 = vpop.f32.mrf.mxu0
  %936 = vmatprep.mubr.bf16.mxu0 0
  %937 = vmatmul.mubr.bf16.gmra.mxu0 %v640
  %v938 = vpop.f32.mrf.mxu0
  %v939 = vadd.f32 %v794, %v938
  %v940 = vpop.f32.mrf.mxu0
  %v941 = vpop.f32.mrf.mxu0
  %v942 = vadd.f32 %v797, %v941
  %v943 = vpop.f32.mrf.mxu0
  %944 = vmatprep.mubr.bf16.mxu0 0
  %945 = vmatmul.mubr.bf16.gmra.mxu0 %v641
  %v946 = vpop.f32.mrf.mxu0
  %v947 = vadd.f32 %v802, %v946
  %v948 = vpop.f32.mrf.mxu0
  %v949 = vpop.f32.mrf.mxu0
  %v950 = vadd.f32 %v805, %v949
  %v951 = vpop.f32.mrf.mxu0
  %952 = vmatprep.mubr.bf16.mxu0 0
  %953 = vmatmul.mubr.bf16.gmra.mxu0 %v642
  %v954 = vpop.f32.mrf.mxu0
  %v955 = vadd.f32 %v810, %v954
  %v956 = vpop.f32.mrf.mxu0
  %v957 = vpop.f32.mrf.mxu0
  %v958 = vadd.f32 %v813, %v957
  %v959 = vpop.f32.mrf.mxu0
  %960 = vmatprep.mubr.bf16.mxu0 0
  %961 = vmatmul.mubr.bf16.gmra.mxu0 %v643
  %v962 = vpop.f32.mrf.mxu0
  %v963 = vadd.f32 %v818, %v962
  %v964 = vpop.f32.mrf.mxu0
  %v965 = vpop.f32.mrf.mxu0
  %v966 = vadd.f32 %v821, %v965
  %v967 = vpop.f32.mrf.mxu0
  %968 = vmatprep.mubr.bf16.mxu0 0
  %969 = vmatmul.mubr.bf16.gmra.mxu0 %v644
  %v970 = vpop.f32.mrf.mxu0
  %v971 = vadd.f32 %v826, %v970
  %v972 = vpop.f32.mrf.mxu0
  %v973 = vpop.f32.mrf.mxu0
  %v974 = vadd.f32 %v829, %v973
  %v975 = vpop.f32.mrf.mxu0
  %976 = vmatprep.mubr.bf16.mxu0 0
  %977 = vmatmul.mubr.bf16.gmra.mxu0 %v645
  %v978 = vpop.f32.mrf.mxu0
  %v979 = vadd.f32 %v834, %v978
  %v980 = vpop.f32.mrf.mxu0
  %v981 = vpop.f32.mrf.mxu0
  %v982 = vadd.f32 %v837, %v981
  %v983 = vpop.f32.mrf.mxu0
  %984 = vmatprep.mubr.bf16.mxu0 0
  %985 = vmatmul.mubr.bf16.gmra.mxu0 %v646
  %v986 = vpop.f32.mrf.mxu0
  %v987 = vadd.f32 %v842, %v986
  %v988 = vpop.f32.mrf.mxu0
  %v989 = vpop.f32.mrf.mxu0
  %v990 = vadd.f32 %v845, %v989
  %v991 = vpop.f32.mrf.mxu0
  %992 = vdwg.mxu0
  %v993 = vld [vmem:[%s8] sm:$0x1]
  %v995 = vlaneseq
  %v996 = vshrl.u32 %v995, 7
  %v997 = vsub.s32 0, %v996
  %v998 = vrot.slane %v993, %v997
  %v1000 = vadd.f32 %v931, %v998
  %v1001 = vadd.f32 %v934, %v998
  %v1002 = vadd.f32 %v939, %v998
  %v1003 = vadd.f32 %v942, %v998
  %v1004 = vadd.f32 %v947, %v998
  %v1005 = vadd.f32 %v950, %v998
  %v1006 = vadd.f32 %v955, %v998
  %v1007 = vadd.f32 %v958, %v998
  %v1008 = vadd.f32 %v963, %v998
  %v1009 = vadd.f32 %v966, %v998
  %v1010 = vadd.f32 %v971, %v998
  %v1011 = vadd.f32 %v974, %v998
  %v1012 = vadd.f32 %v979, %v998
  %v1013 = vadd.f32 %v982, %v998
  %v1014 = vadd.f32 %v987, %v998
  %v1015 = vadd.f32 %v990, %v998
  %v1016 = vmax.f32 %v1000, 0.0
  %v1017 = vmax.f32 %v1001, 0.0
  %v1018 = vmax.f32 %v1002, 0.0
  %v1019 = vmax.f32 %v1003, 0.0
  %v1020 = vmax.f32 %v1004, 0.0
  %v1021 = vmax.f32 %v1005, 0.0
  %v1022 = vmax.f32 %v1006, 0.0
  %v1023 = vmax.f32 %v1007, 0.0
  %v1024 = vmax.f32 %v1008, 0.0
  %v1025 = vmax.f32 %v1009, 0.0
  %v1026 = vmax.f32 %v1010, 0.0
  %v1027 = vmax.f32 %v1011, 0.0
  %v1028 = vmax.f32 %v1012, 0.0
  %v1029 = vmax.f32 %v1013, 0.0
  %v1030 = vmax.f32 %v1014, 0.0
  %v1031 = vmax.f32 %v1015, 0.0
  %v1032 = vpack.c.bf16 %v1017, %v1016
  %v1033 = vpack.c.bf16 %v1019, %v1018
  %v1034 = vpack.c.bf16 %v1021, %v1020
  %v1035 = vpack.c.bf16 %v1023, %v1022
  %v1036 = vpack.c.bf16 %v1025, %v1024
  %v1037 = vpack.c.bf16 %v1027, %v1026
  %v1038 = vpack.c.bf16 %v1029, %v1028
  %v1039 = vpack.c.bf16 %v1031, %v1030
  %v1040 = vld [vmem:[%s9] sm:$0xf]
  %v1041 = vld [vmem:[%s9 + $0x4] sm:$0xf]
  %v1042 = vld [vmem:[%s9 + $0x8] sm:$0xf]
  %v1043 = vld [vmem:[%s9 + $0xc] sm:$0xf]
  %v1044 = vld [vmem:[%s9 + $0x10] sm:$0xf]
  %v1045 = vld [vmem:[%s9 + $0x14] sm:$0xf]
  %v1046 = vld [vmem:[%s9 + $0x18] sm:$0xf]
  %v1047 = vld [vmem:[%s9 + $0x1c] sm:$0xf]
  %v1048 = vld [vmem:[%s9 + $0x20] sm:$0xf]
  %v1049 = vld [vmem:[%s9 + $0x24] sm:$0xf]
  %v1050 = vld [vmem:[%s9 + $0x28] sm:$0xf]
  %v1051 = vld [vmem:[%s9 + $0x2c] sm:$0xf]
  %v1052 = vld [vmem:[%s9 + $0x30] sm:$0xf]
  %v1053 = vld [vmem:[%s9 + $0x34] sm:$0xf]
  %v1054 = vld [vmem:[%s9 + $0x38] sm:$0xf]
  %v1055 = vld [vmem:[%s9 + $0x3c] sm:$0xf]
  %v1056 = vld [vmem:[%s10] sm:$0x1]
  %v1058 = vlaneseq
  %v1059 = vshrl.u32 %v1058, 7
  %v1060 = vsub.s32 0, %v1059
  %v1061 = vrot.slane %v1056, %v1060
  %v1079 = vunpack.c.l.b16 %v1040
  %v1080 = vunpack.c.l.b16 %v1041
  %v1081 = vunpack.c.l.b16 %v1042
  %v1082 = vunpack.c.l.b16 %v1043
  %v1083 = vunpack.c.l.b16 %v1044
  %v1084 = vunpack.c.l.b16 %v1045
  %v1085 = vunpack.c.l.b16 %v1046
  %v1086 = vunpack.c.l.b16 %v1047
  %v1087 = vunpack.c.l.b16 %v1048
  %v1088 = vunpack.c.l.b16 %v1049
  %v1089 = vunpack.c.l.b16 %v1050
  %v1090 = vunpack.c.l.b16 %v1051
  %v1091 = vunpack.c.l.b16 %v1052
  %v1092 = vunpack.c.l.b16 %v1053
  %v1093 = vunpack.c.l.b16 %v1054
  %v1094 = vunpack.c.l.b16 %v1055
  %v1095 = vpack.c.b16 %v1080, %v1079
  %v1096 = vpack.c.b16 %v1082, %v1081
  %v1097 = vpack.c.b16 %v1084, %v1083
  %v1098 = vpack.c.b16 %v1086, %v1085
  %v1099 = vpack.c.b16 %v1088, %v1087
  %v1100 = vpack.c.b16 %v1090, %v1089
  %v1101 = vpack.c.b16 %v1092, %v1091
  %v1102 = vpack.c.b16 %v1094, %v1093
  %1111 = vmatprep.subr.bf16.mxu0 0
  %1112 = vmatpush1.bf16.msra.mxu0 %v1102
  %1113 = vmatprep.subr.bf16.mxu0 0
  %1114 = vmatpush1.bf16.msra.mxu0 %v1101
  %1115 = vmatprep.subr.bf16.mxu0 0
  %1116 = vmatpush1.bf16.msra.mxu0 %v1100
  %1117 = vmatprep.subr.bf16.mxu0 0
  %1118 = vmatpush1.bf16.msra.mxu0 %v1099
  %1119 = vmatprep.subr.bf16.mxu0 0
  %1120 = vmatpush1.bf16.msra.mxu0 %v1098
  %1121 = vmatprep.subr.bf16.mxu0 0
  %1122 = vmatpush1.bf16.msra.mxu0 %v1097
  %1123 = vmatprep.subr.bf16.mxu0 0
  %1124 = vmatpush1.bf16.msra.mxu0 %v1096
  %1125 = vmatprep.subr.bf16.mxu0 0
  %1126 = vmatpush1.bf16.msra.mxu0 %v1095
  %1127 = vmatprep.subr.bf16.mxu0 0
  %1128 = vmatpush2.bf16.msra.mxu0 0
  %1129 = vmatprep.subr.bf16.mxu0 0
  %1130 = vmatpush2.bf16.msra.mxu0 0
  %1131 = vmatprep.subr.bf16.mxu0 0
  %1132 = vmatpush2.bf16.msra.mxu0 0
  %1133 = vmatprep.subr.bf16.mxu0 0
  %1134 = vmatpush2.bf16.msra.mxu0 0
  %1135 = vmatprep.subr.bf16.mxu0 0
  %1136 = vmatpush2.bf16.msra.mxu0 0
  %1137 = vmatprep.subr.bf16.mxu0 0
  %1138 = vmatpush2.bf16.msra.mxu0 0
  %1139 = vmatprep.subr.bf16.mxu0 0
  %1140 = vmatpush2.bf16.msra.mxu0 0
  %1141 = vmatprep.subr.bf16.mxu0 0
  %1142 = vmatpush2.bf16.msra.mxu0 0
  %1143 = vmatprep.mubr.bf16.mxu0 0
  %1144 = vmatmul.mubr.bf16.gmra.mxu0 %v1032
  %v1145 = vpop.f32.mrf.mxu0
  %v1146 = vadd.f32 %v1061, %v1145
  %v1147 = vpop.f32.mrf.mxu0
  %v1148 = vpop.f32.mrf.mxu0
  %v1149 = vadd.f32 %v1061, %v1148
  %v1150 = vpop.f32.mrf.mxu0
  %1151 = vmatprep.mubr.bf16.mxu0 0
  %1152 = vmatmul.mubr.bf16.gmra.mxu0 %v1033
  %v1153 = vpop.f32.mrf.mxu0
  %v1154 = vadd.f32 %v1061, %v1153
  %v1155 = vpop.f32.mrf.mxu0
  %v1156 = vpop.f32.mrf.mxu0
  %v1157 = vadd.f32 %v1061, %v1156
  %v1158 = vpop.f32.mrf.mxu0
  %1159 = vmatprep.mubr.bf16.mxu0 0
  %1160 = vmatmul.mubr.bf16.gmra.mxu0 %v1034
  %v1161 = vpop.f32.mrf.mxu0
  %v1162 = vadd.f32 %v1061, %v1161
  %v1163 = vpop.f32.mrf.mxu0
  %v1164 = vpop.f32.mrf.mxu0
  %v1165 = vadd.f32 %v1061, %v1164
  %v1166 = vpop.f32.mrf.mxu0
  %1167 = vmatprep.mubr.bf16.mxu0 0
  %1168 = vmatmul.mubr.bf16.gmra.mxu0 %v1035
  %v1169 = vpop.f32.mrf.mxu0
  %v1170 = vadd.f32 %v1061, %v1169
  %v1171 = vpop.f32.mrf.mxu0
  %v1172 = vpop.f32.mrf.mxu0
  %v1173 = vadd.f32 %v1061, %v1172
  %v1174 = vpop.f32.mrf.mxu0
  %1175 = vmatprep.mubr.bf16.mxu0 0
  %1176 = vmatmul.mubr.bf16.gmra.mxu0 %v1036
  %v1177 = vpop.f32.mrf.mxu0
  %v1178 = vadd.f32 %v1061, %v1177
  %v1179 = vpop.f32.mrf.mxu0
  %v1180 = vpop.f32.mrf.mxu0
  %v1181 = vadd.f32 %v1061, %v1180
  %v1182 = vpop.f32.mrf.mxu0
  %1183 = vmatprep.mubr.bf16.mxu0 0
  %1184 = vmatmul.mubr.bf16.gmra.mxu0 %v1037
  %v1185 = vpop.f32.mrf.mxu0
  %v1186 = vadd.f32 %v1061, %v1185
  %v1187 = vpop.f32.mrf.mxu0
  %v1188 = vpop.f32.mrf.mxu0
  %v1189 = vadd.f32 %v1061, %v1188
  %v1190 = vpop.f32.mrf.mxu0
  %1191 = vmatprep.mubr.bf16.mxu0 0
  %1192 = vmatmul.mubr.bf16.gmra.mxu0 %v1038
  %v1193 = vpop.f32.mrf.mxu0
  %v1194 = vadd.f32 %v1061, %v1193
  %v1195 = vpop.f32.mrf.mxu0
  %v1196 = vpop.f32.mrf.mxu0
  %v1197 = vadd.f32 %v1061, %v1196
  %v1198 = vpop.f32.mrf.mxu0
  %1199 = vmatprep.mubr.bf16.mxu0 0
  %1200 = vmatmul.mubr.bf16.gmra.mxu0 %v1039
  %v1201 = vpop.f32.mrf.mxu0
  %v1202 = vadd.f32 %v1061, %v1201
  %v1203 = vpop.f32.mrf.mxu0
  %v1204 = vpop.f32.mrf.mxu0
  %v1205 = vadd.f32 %v1061, %v1204
  %v1206 = vpop.f32.mrf.mxu0
  %1207 = vdwg.mxu0
  %v1208 = vmax.f32 %v1146, 0.0
  %v1209 = vmax.f32 %v1149, 0.0
  %v1210 = vmax.f32 %v1154, 0.0
  %v1211 = vmax.f32 %v1157, 0.0
  %v1212 = vmax.f32 %v1162, 0.0
  %v1213 = vmax.f32 %v1165, 0.0
  %v1214 = vmax.f32 %v1170, 0.0
  %v1215 = vmax.f32 %v1173, 0.0
  %v1216 = vmax.f32 %v1178, 0.0
  %v1217 = vmax.f32 %v1181, 0.0
  %v1218 = vmax.f32 %v1186, 0.0
  %v1219 = vmax.f32 %v1189, 0.0
  %v1220 = vmax.f32 %v1194, 0.0
  %v1221 = vmax.f32 %v1197, 0.0
  %v1222 = vmax.f32 %v1202, 0.0
  %v1223 = vmax.f32 %v1205, 0.0
  %v1224 = vpack.c.bf16 %v1209, %v1208
  %v1225 = vpack.c.bf16 %v1211, %v1210
  %v1226 = vpack.c.bf16 %v1213, %v1212
  %v1227 = vpack.c.bf16 %v1215, %v1214
  %v1228 = vpack.c.bf16 %v1217, %v1216
  %v1229 = vpack.c.bf16 %v1219, %v1218
  %v1230 = vpack.c.bf16 %v1221, %v1220
  %v1231 = vpack.c.bf16 %v1223, %v1222
  %v1232 = vld [vmem:[%s11] sm:$0xf]
  %v1233 = vld [vmem:[%s11 + $0x4] sm:$0xf]
  %v1234 = vld [vmem:[%s11 + $0x8] sm:$0xf]
  %v1235 = vld [vmem:[%s11 + $0xc] sm:$0xf]
  %v1236 = vld [vmem:[%s11 + $0x10] sm:$0xf]
  %v1237 = vld [vmem:[%s11 + $0x14] sm:$0xf]
  %v1238 = vld [vmem:[%s11 + $0x18] sm:$0xf]
  %v1239 = vld [vmem:[%s11 + $0x1c] sm:$0xf]
  %v1240 = vld [vmem:[%s12] sm:$0x1]
  %v1242 = vlaneseq
  %v1243 = vshrl.u32 %v1242, 7
  %v1244 = vsub.s32 0, %v1243
  %v1245 = vrot.slane %v1240, %v1244
  %v1255 = vunpack.c.l.b16 %v1232
  %v1256 = vunpack.c.l.b16 %v1233
  %v1257 = vunpack.c.l.b16 %v1234
  %v1258 = vunpack.c.l.b16 %v1235
  %v1259 = vunpack.c.l.b16 %v1236
  %v1260 = vunpack.c.l.b16 %v1237
  %v1261 = vunpack.c.l.b16 %v1238
  %v1262 = vunpack.c.l.b16 %v1239
  %v1263 = vpack.c.b16 %v1256, %v1255
  %v1264 = vpack.c.b16 %v1258, %v1257
  %v1265 = vpack.c.b16 %v1260, %v1259
  %v1266 = vpack.c.b16 %v1262, %v1261
  %vm1271 = vcmask 523264
  %v1273 = vsel %vm1271, %v1224, 0
  %v1276 = vsel %vm1271, %v1225, 0
  %v1279 = vsel %vm1271, %v1226, 0
  %v1282 = vsel %vm1271, %v1227, 0
  %v1285 = vsel %vm1271, %v1228, 0
  %v1288 = vsel %vm1271, %v1229, 0
  %v1291 = vsel %vm1271, %v1230, 0
  %v1294 = vsel %vm1271, %v1231, 0
  %1296 = vmatprep.subr.bf16.mxu0 0
  %1297 = vmatpush1.bf16.msra.mxu0 0
  %1298 = vmatprep.subr.bf16.mxu0 0
  %1299 = vmatpush1.bf16.msra.mxu0 0
  %1300 = vmatprep.subr.bf16.mxu0 0
  %1301 = vmatpush1.bf16.msra.mxu0 0
  %1302 = vmatprep.subr.bf16.mxu0 0
  %1303 = vmatpush1.bf16.msra.mxu0 0
  %1304 = vmatprep.subr.bf16.mxu0 0
  %1305 = vmatpush1.bf16.msra.mxu0 %v1266
  %1306 = vmatprep.subr.bf16.mxu0 0
  %1307 = vmatpush1.bf16.msra.mxu0 %v1265
  %1308 = vmatprep.subr.bf16.mxu0 0
  %1309 = vmatpush1.bf16.msra.mxu0 %v1264
  %1310 = vmatprep.subr.bf16.mxu0 0
  %1311 = vmatpush1.bf16.msra.mxu0 %v1263
  %1312 = vmatprep.subr.bf16.mxu0 0
  %1313 = vmatpush2.bf16.msra.mxu0 0
  %1314 = vmatprep.subr.bf16.mxu0 0
  %1315 = vmatpush2.bf16.msra.mxu0 0
  %1316 = vmatprep.subr.bf16.mxu0 0
  %1317 = vmatpush2.bf16.msra.mxu0 0
  %1318 = vmatprep.subr.bf16.mxu0 0
  %1319 = vmatpush2.bf16.msra.mxu0 0
  %1320 = vmatprep.subr.bf16.mxu0 0
  %1321 = vmatpush2.bf16.msra.mxu0 0
  %1322 = vmatprep.subr.bf16.mxu0 0
  %1323 = vmatpush2.bf16.msra.mxu0 0
  %1324 = vmatprep.subr.bf16.mxu0 0
  %1325 = vmatpush2.bf16.msra.mxu0 0
  %1326 = vmatprep.subr.bf16.mxu0 0
  %1327 = vmatpush2.bf16.msra.mxu0 0
  %1328 = vmatprep.mubr.bf16.mxu0 0
  %1329 = vmatmul.mubr.bf16.gmra.mxu0 %v1273
  %v1330 = vpop.f32.mrf.mxu0
  %v1331 = vadd.f32 %v1245, %v1330
  %v1332 = vpop.f32.mrf.mxu0
  %v1333 = vpop.f32.mrf.mxu0
  %v1334 = vadd.f32 %v1245, %v1333
  %v1335 = vpop.f32.mrf.mxu0
  %1336 = vmatprep.mubr.bf16.mxu0 0
  %1337 = vmatmul.mubr.bf16.gmra.mxu0 %v1276
  %v1338 = vpop.f32.mrf.mxu0
  %v1339 = vadd.f32 %v1245, %v1338
  %v1340 = vpop.f32.mrf.mxu0
  %v1341 = vpop.f32.mrf.mxu0
  %v1342 = vadd.f32 %v1245, %v1341
  %v1343 = vpop.f32.mrf.mxu0
  %1344 = vmatprep.mubr.bf16.mxu0 0
  %1345 = vmatmul.mubr.bf16.gmra.mxu0 %v1279
  %v1346 = vpop.f32.mrf.mxu0
  %v1347 = vadd.f32 %v1245, %v1346
  %v1348 = vpop.f32.mrf.mxu0
  %v1349 = vpop.f32.mrf.mxu0
  %v1350 = vadd.f32 %v1245, %v1349
  %v1351 = vpop.f32.mrf.mxu0
  %1352 = vmatprep.mubr.bf16.mxu0 0
  %1353 = vmatmul.mubr.bf16.gmra.mxu0 %v1282
  %v1354 = vpop.f32.mrf.mxu0
  %v1355 = vadd.f32 %v1245, %v1354
  %v1356 = vpop.f32.mrf.mxu0
  %v1357 = vpop.f32.mrf.mxu0
  %v1358 = vadd.f32 %v1245, %v1357
  %v1359 = vpop.f32.mrf.mxu0
  %1360 = vmatprep.mubr.bf16.mxu0 0
  %1361 = vmatmul.mubr.bf16.gmra.mxu0 %v1285
  %v1362 = vpop.f32.mrf.mxu0
  %v1363 = vadd.f32 %v1245, %v1362
  %v1364 = vpop.f32.mrf.mxu0
  %v1365 = vpop.f32.mrf.mxu0
  %v1366 = vadd.f32 %v1245, %v1365
  %v1367 = vpop.f32.mrf.mxu0
  %1368 = vmatprep.mubr.bf16.mxu0 0
  %1369 = vmatmul.mubr.bf16.gmra.mxu0 %v1288
  %v1370 = vpop.f32.mrf.mxu0
  %v1371 = vadd.f32 %v1245, %v1370
  %v1372 = vpop.f32.mrf.mxu0
  %v1373 = vpop.f32.mrf.mxu0
  %v1374 = vadd.f32 %v1245, %v1373
  %v1375 = vpop.f32.mrf.mxu0
  %1376 = vmatprep.mubr.bf16.mxu0 0
  %1377 = vmatmul.mubr.bf16.gmra.mxu0 %v1291
  %v1378 = vpop.f32.mrf.mxu0
  %v1379 = vadd.f32 %v1245, %v1378
  %v1380 = vpop.f32.mrf.mxu0
  %v1381 = vpop.f32.mrf.mxu0
  %v1382 = vadd.f32 %v1245, %v1381
  %v1383 = vpop.f32.mrf.mxu0
  %1384 = vmatprep.mubr.bf16.mxu0 0
  %1385 = vmatmul.mubr.bf16.gmra.mxu0 %v1294
  %v1386 = vpop.f32.mrf.mxu0
  %v1387 = vadd.f32 %v1245, %v1386
  %v1388 = vpop.f32.mrf.mxu0
  %v1389 = vpop.f32.mrf.mxu0
  %v1390 = vadd.f32 %v1245, %v1389
  %v1391 = vpop.f32.mrf.mxu0
  %1392 = vdwg.mxu0
  %vm1393 = vcmask 23552
  %1394 = vst.msk [vmem:[%s13] sm:$0xff] %vm1393, %v1331
  %1395 = vst.msk [vmem:[%s13 + $0x8] sm:$0xff] %vm1393, %v1334
  %1396 = vst.msk [vmem:[%s13 + $0x10] sm:$0xff] %vm1393, %v1339
  %1397 = vst.msk [vmem:[%s13 + $0x18] sm:$0xff] %vm1393, %v1342
  %1398 = vst.msk [vmem:[%s13 + $0x20] sm:$0xff] %vm1393, %v1347
  %1399 = vst.msk [vmem:[%s13 + $0x28] sm:$0xff] %vm1393, %v1350
  %1400 = vst.msk [vmem:[%s13 + $0x30] sm:$0xff] %vm1393, %v1355
  %1401 = vst.msk [vmem:[%s13 + $0x38] sm:$0xff] %vm1393, %v1358
  %1402 = vst.msk [vmem:[%s13 + $0x40] sm:$0xff] %vm1393, %v1363
  %1403 = vst.msk [vmem:[%s13 + $0x48] sm:$0xff] %vm1393, %v1366
  %1404 = vst.msk [vmem:[%s13 + $0x50] sm:$0xff] %vm1393, %v1371
  %1405 = vst.msk [vmem:[%s13 + $0x58] sm:$0xff] %vm1393, %v1374
  %1406 = vst.msk [vmem:[%s13 + $0x60] sm:$0xff] %vm1393, %v1379
  %1407 = vst.msk [vmem:[%s13 + $0x68] sm:$0xff] %vm1393, %v1382
  %1408 = vst.msk [vmem:[%s13 + $0x70] sm:$0xff] %vm1393, %v1387
  %1409 = vst.msk [vmem:[%s13 + $0x78] sm:$0xff] %vm1393, %v1390
  // Predicated region
  $region54: #{tpu_custom_call.1} parent=0 // pred_check
    _
  $region55: #{tpu_custom_call.1} parent=0 // pred_check_branch
    %1411 = sbr.rel (0) target = $region57
  $region56: #{tpu_custom_call.1} parent=0 // pred_region
    _
  $region57: #{tpu_custom_call.1} parent=0 // pred_fallthru
    _
  // Predicated region
  $region58: #{tpu_custom_call.1} parent=0 // pred_check
    _
  $region59: #{tpu_custom_call.1} parent=0 // pred_check_branch
    %1413 = sbr.rel (0) target = $region61
  $region60: #{tpu_custom_call.1} parent=0 // pred_region
    _
  $region61: #{tpu_custom_call.1} parent=0 // pred_fallthru
    _

</llo_original>
